<compile_context>
chip_gen: v7x
topology: tpu7x:2x2x1
jax: 0.10.0
libtpu: 0.0.40
codegen_flags: <defaults>
</compile_context>

<pallas_src>
import functools

import jax
import jax.numpy as jnp
from jax import lax
from jax.experimental import pallas as pl
from jax.experimental.pallas import tpu as pltpu

_EPS = 1e-5                     # PyTorch nn.LayerNorm default eps
_NEG = float(-2 ** 32 + 1)      # mask fill value used by the PyTorch module


def _layernorm(x, gamma, beta):
    mu = jnp.mean(x, axis=-1, keepdims=True)
    c = x - mu
    var = jnp.mean(c * c, axis=-1, keepdims=True)
    return c * lax.rsqrt(var + _EPS) * gamma + beta


def _encoder_kernel(num_heads, causal,
                    seq_ref, mask_ref,
                    wq_ref, bq_ref, wkv_ref, bkv_ref,
                    w1_ref, b1_ref, w2_ref, b2_ref,
                    lng_ref, lnb_ref, out_ref):
    S, H = seq_ref.shape[1], seq_ref.shape[2]
    hd = H // num_heads
    f32, bf16 = jnp.float32, jnp.bfloat16

    x = seq_ref[0]                                   # (S, H) f32
    m = jnp.transpose(mask_ref[0])                   # (1, S) -> (S, 1)
    x = x * m                                        # seq = seq * mask

    # ---- ln_1 ; queries = ln_1(seq), keys = seq -----------------------------
    xn = _layernorm(x, lng_ref[0], lnb_ref[0])

    # ---- projections: Q on ln_1(seq); K|V fused on seq (bf16 MXU, f32 acc) --
    Q = jnp.dot(xn.astype(bf16), wq_ref[...],
                preferred_element_type=f32) + bq_ref[...]            # (S, H)
    KV = jnp.dot(x.astype(bf16), wkv_ref[...],
                 preferred_element_type=f32) + bkv_ref[...]          # (S, 2H)

    # ---- split heads into a leading batch axis ------------------------------
    Qh = jnp.stack([Q[:, h * hd:(h + 1) * hd] for h in range(num_heads)], 0)
    Kh = jnp.stack([KV[:, h * hd:(h + 1) * hd] for h in range(num_heads)], 0)
    Vh = jnp.stack([KV[:, H + h * hd:H + (h + 1) * hd]
                    for h in range(num_heads)], 0)                   # (NH,S,hd)
    scale = jnp.float32(1.0 / (H ** 0.5))   # module scales by hidden_size**0.5
    Qh = (Qh * scale).astype(bf16)
    Kh = Kh.astype(bf16)
    Vh = Vh.astype(bf16)

    # ---- batched scores + masking + softmax ---------------------------------
    sc = jnp.einsum('hqd,hkd->hqk', Qh, Kh,
                    preferred_element_type=f32)                      # (NH,S,S)
    neg = jnp.float32(_NEG)
    k_live = (jnp.abs(jnp.sum(x, axis=-1, keepdims=True)) > 0.0).astype(f32)
    sc = jnp.where(jnp.transpose(k_live) > 0.0, sc, neg)   # dead-key columns
    if causal:
        row = lax.broadcasted_iota(jnp.int32, (S, S), 0)
        col = lax.broadcasted_iota(jnp.int32, (S, S), 1)
        sc = jnp.where(col <= row, sc, neg)
    sc_max = jnp.max(sc, axis=-1, keepdims=True)
    e = jnp.exp(sc - sc_max)
    denom = jnp.sum(e, axis=-1, keepdims=True)
    p = (e * pl.reciprocal(denom, approx=True)).astype(bf16)         # (NH,S,S)
    # TODO(synk): attention dropout is identity (inference-mode forward).

    ctx = jnp.einsum('hqk,hkd->hqd', p, Vh,
                     preferred_element_type=f32)                     # (NH,S,hd)
    attn = jnp.concatenate([ctx[h] for h in range(num_heads)], axis=-1)
    # query padding mask (== scaling softmax rows, since dropout = identity)
    q_live = (jnp.abs(jnp.sum(xn, axis=-1, keepdims=True)) > 0.0).astype(f32)
    attn = attn * q_live + xn                        # residual with queries
    seq2 = x + attn                                  # seq = seq + attn_out

    # ---- PositionwiseFeedForward on ln_2(seq) -------------------------------
    y = _layernorm(seq2, lng_ref[1], lnb_ref[1])
    h1 = jnp.maximum(jnp.dot(y.astype(bf16), w1_ref[...],
                             preferred_element_type=f32) + b1_ref[...], 0.0)
    h2 = jnp.dot(h1.astype(bf16), w2_ref[...],
                 preferred_element_type=f32) + b2_ref[...]
    # TODO(synk): FFN dropout is identity (inference-mode forward).
    ff = _layernorm(h2 + y, lng_ref[2], lnb_ref[2])  # FFN's own LayerNorm
    ff = ff * m                                      # ff_out *= mask
    seq3 = seq2 + ff

    out_ref[0] = _layernorm(seq3, lng_ref[3], lnb_ref[3]).astype(out_ref.dtype)


def _vmem_limit_bytes(S, H, Hff, num_heads):
    """Per-step footprint: double-buffered seq/out blocks + weights + live
    f32 intermediates (scores/probs/FFN hidden), with 1.5x slack."""
    f32, bf16 = 4, 2
    io_blocks = 2 * 2 * (S * H * f32)                      # seq + out, x2 bufs
    weights = 2 * ((3 * H * H + 2 * H * Hff) * bf16
                   + (3 * H + Hff + H + 8 * H + S) * f32)  # x2 bufs (default)
    live = (8 * S * H + 2 * S * Hff + 3 * num_heads * S * S) * f32
    est = int((io_blocks + weights + live) * 1.5) + (2 << 20)
    return max(32 * 1024 * 1024, min(est, 120 * 1024 * 1024))


def transformer_encoder(seq, mask, params, *, num_heads, causal=True):
    """Fused TransformerEncoder.forward(seq, mask) — one grid step per batch."""
    B, S, H = seq.shape
    Hff = params["w1"].shape[1]
    f32, bf16 = jnp.float32, jnp.bfloat16

    # Weights pre-cast to bf16 for the MXU (half the DMA); K|V packed as (H,2H).
    wq = params["wqkv"][0].astype(bf16)                               # (H, H)
    wkv = jnp.concatenate([params["wqkv"][1], params["wqkv"][2]],
                          axis=1).astype(bf16)                        # (H, 2H)
    bq = params["bqkv"][0:1].astype(f32)                              # (1, H)
    bkv = jnp.concatenate([params["bqkv"][1],
                           params["bqkv"][2]])[None].astype(f32)      # (1, 2H)
    w1 = params["w1"].astype(bf16)
    w2 = params["w2"].astype(bf16)
    b1 = params["b1"].reshape(1, Hff).astype(f32)
    b2 = params["b2"].reshape(1, H).astype(f32)
    ln_g = params["ln_g"].astype(f32)
    ln_b = params["ln_b"].astype(f32)
    mask_rows = jnp.swapaxes(mask.astype(f32), 1, 2)                  # (B,1,S)

    kernel = functools.partial(_encoder_kernel, num_heads, causal)
    const2 = lambda b: (0, 0)
    return pl.pallas_call(
        kernel,
        out_shape=jax.ShapeDtypeStruct((B, S, H), jnp.float32),
        grid_spec=pltpu.PrefetchScalarGridSpec(
            num_scalar_prefetch=0,
            grid=(B,),
            in_specs=[
                pl.BlockSpec((1, S, H), lambda b: (b, 0, 0)),    # seq
                pl.BlockSpec((1, 1, S), lambda b: (b, 0, 0)),    # mask, lane-major
                pl.BlockSpec((H, H), const2),                    # Wq
                pl.BlockSpec((1, H), const2),                    # bq
                pl.BlockSpec((H, 2 * H), const2),                # W[k|v]
                pl.BlockSpec((1, 2 * H), const2),                # b[k|v]
                pl.BlockSpec((H, Hff), const2),                  # FFN W1
                pl.BlockSpec((1, Hff), const2),                  # FFN b1
                pl.BlockSpec((Hff, H), const2),                  # FFN W2
                pl.BlockSpec((1, H), const2),                    # FFN b2
                pl.BlockSpec((4, H), const2),                    # LN gammas
                pl.BlockSpec((4, H), const2),                    # LN betas
            ],
            out_specs=pl.BlockSpec((1, S, H), lambda b: (b, 0, 0)),
        ),
        compiler_params=pltpu.CompilerParams(
            dimension_semantics=("parallel",),
            vmem_limit_bytes=_vmem_limit_bytes(S, H, Hff, num_heads)),
    )(seq.astype(f32), mask_rows, wq, bq, wkv, bkv,
      w1, b1, w2, b2, ln_g, ln_b)


# --------------------------- pure-JAX reference ------------------------------
def _reference(seq, mask, params, num_heads, causal=True):
    mm = functools.partial(jnp.matmul, precision=lax.Precision.HIGHEST)

    def ln(v, g, b):
        mu = v.mean(-1, keepdims=True)
        var = ((v - mu) ** 2).mean(-1, keepdims=True)
        return (v - mu) / jnp.sqrt(var + _EPS) * g + b

    N, Tq, H = seq.shape
    hd = H // num_heads
    x = seq * mask
    xn = ln(x, params["ln_g"][0], params["ln_b"][0])
    queries, keys = xn, x

    Q = mm(queries, params["wqkv"][0]) + params["bqkv"][0]
    K = mm(keys,    params["wqkv"][1]) + params["bqkv"][1]
    V = mm(keys,    params["wqkv"][2]) + params["bqkv"][2]

    def split_heads(t):  # torch.cat(torch.split(t, hd, dim=2), dim=0)
        return jnp.concatenate(
            [t[..., h * hd:(h + 1) * hd] for h in range(num_heads)], axis=0)

    Q_, K_, V_ = split_heads(Q), split_heads(K), split_heads(V)
    sc = mm(Q_, jnp.swapaxes(K_, 1, 2)) / (H ** 0.5)

    key_mask = jnp.sign(jnp.abs(keys.sum(-1)))                     # (N, Tk)
    key_mask = jnp.tile(key_mask, (num_heads, 1))[:, None, :]      # (N*h,1,Tk)
    key_mask = jnp.repeat(key_mask, Tq, axis=1)
    sc = jnp.where(key_mask == 0, _NEG, sc)
    if causal:
        tril = jnp.tril(jnp.ones((Tq, Tq), jnp.float32))
        sc = jnp.where(tril[None] == 0, _NEG, sc)
    p = jax.nn.softmax(sc, axis=-1)

    qmask = jnp.sign(jnp.abs(queries.sum(-1)))
    qmask = jnp.tile(qmask, (num_heads, 1))[:, :, None]
    p = p * qmask
    ow = mm(p, V_)
    out = jnp.concatenate([ow[h * N:(h + 1) * N] for h in range(num_heads)],
                          axis=2)
    attn = out + queries

    seq2 = x + attn
    y = ln(seq2, params["ln_g"][1], params["ln_b"][1])
    h1 = jax.nn.relu(mm(y, params["w1"]) + params["b1"])
    h2 = mm(h1, params["w2"]) + params["b2"]
    ff = ln(h2 + y, params["ln_g"][2], params["ln_b"][2])
    ff = ff * mask
    seq3 = seq2 + ff
    return ln(seq3, params["ln_g"][3], params["ln_b"][3])


if __name__ == "__main__":
    key = jax.random.PRNGKey(0)
    B, S, H, NH = 2, 8, 32, 4      # batch, seq, hidden, heads
    Hff = H                        # FFN hidden = hidden_size in the module

    ks = jax.random.split(key, 8)

    def xavier(k, shape):
        fan_in, fan_out = shape[-2], shape[-1]
        lim = (6.0 / (fan_in + fan_out)) ** 0.5
        return jax.random.uniform(k, shape, jnp.float32, -lim, lim)

    params = dict(
        wqkv=xavier(ks[0], (3, H, H)),
        bqkv=jnp.zeros((3, H), jnp.float32),
        w1=xavier(ks[1], (H, Hff)),
        b1=0.01 * jax.random.normal(ks[2], (1, Hff), jnp.float32),
        w2=xavier(ks[3], (Hff, H)),
        b2=0.01 * jax.random.normal(ks[4], (1, H), jnp.float32),
        ln_g=1.0 + 0.05 * jax.random.normal(ks[5], (4, H), jnp.float32),
        ln_b=0.05 * jax.random.normal(ks[6], (4, H), jnp.float32),
    )

    seq = jax.random.normal(ks[7], (B, S, H), jnp.float32)
    # mask: last two sequence positions are padding
    valid = (jnp.arange(S) < (S - 2)).astype(jnp.float32)
    mask = jnp.broadcast_to(valid[None, :, None], (B, S, 1))

    out = transformer_encoder(seq, mask, params, num_heads=NH, causal=True)
    out = jax.block_until_ready(out)

    ref = _reference(seq, mask, params, NH, causal=True)
    assert out.shape == (B, S, H), out.shape
    assert out.dtype == jnp.float32
    err = float(jnp.max(jnp.abs(out - ref)))
    # bf16 MXU operands vs the f32/HIGHEST reference -> ~1e-3 level agreement.
    assert jnp.allclose(out, ref, atol=2e-2, rtol=2e-2), err

    print("KERNEL_OK")
</pallas_src>

<mosaic_0001>
module attributes {stable_mosaic.version = 11 : i64} {
  func.func @_encoder_kernel(%arg0: i32, %arg1: memref<1x8x32xf32, #tpu.memory_space<vmem>>, %arg2: memref<1x1x8xf32, #tpu.memory_space<vmem>>, %arg3: memref<32x32xbf16, #tpu.memory_space<vmem>>, %arg4: memref<1x32xf32, #tpu.memory_space<vmem>>, %arg5: memref<32x64xbf16, #tpu.memory_space<vmem>>, %arg6: memref<1x64xf32, #tpu.memory_space<vmem>>, %arg7: memref<32x32xbf16, #tpu.memory_space<vmem>>, %arg8: memref<1x32xf32, #tpu.memory_space<vmem>>, %arg9: memref<32x32xbf16, #tpu.memory_space<vmem>>, %arg10: memref<1x32xf32, #tpu.memory_space<vmem>>, %arg11: memref<4x32xf32, #tpu.memory_space<vmem>>, %arg12: memref<4x32xf32, #tpu.memory_space<vmem>>, %arg13: memref<1x8x32xf32, #tpu.memory_space<vmem>>) attributes {dimension_semantics = [#tpu.dimension_semantics<parallel>], iteration_bounds = array<i64: 2>, scalar_prefetch = 0 : i64, scratch_operands = 0 : i64, tpu.core_type = #tpu.core_type<tc>, window_params = [{transform_indices = @transform_0, window_bounds = array<i64: 1, 8, 32>}, {transform_indices = @transform_1, window_bounds = array<i64: 1, 1, 8>}, {pipeline_mode = #tpu.pipeline_mode<synchronous>, transform_indices = @transform_2, window_bounds = array<i64: 32, 32>}, {pipeline_mode = #tpu.pipeline_mode<synchronous>, transform_indices = @transform_3, window_bounds = array<i64: 1, 32>}, {pipeline_mode = #tpu.pipeline_mode<synchronous>, transform_indices = @transform_4, window_bounds = array<i64: 32, 64>}, {pipeline_mode = #tpu.pipeline_mode<synchronous>, transform_indices = @transform_5, window_bounds = array<i64: 1, 64>}, {pipeline_mode = #tpu.pipeline_mode<synchronous>, transform_indices = @transform_6, window_bounds = array<i64: 32, 32>}, {pipeline_mode = #tpu.pipeline_mode<synchronous>, transform_indices = @transform_7, window_bounds = array<i64: 1, 32>}, {pipeline_mode = #tpu.pipeline_mode<synchronous>, transform_indices = @transform_8, window_bounds = array<i64: 32, 32>}, {pipeline_mode = #tpu.pipeline_mode<synchronous>, transform_indices = @transform_9, window_bounds = array<i64: 1, 32>}, {pipeline_mode = #tpu.pipeline_mode<synchronous>, transform_indices = @transform_10, window_bounds = array<i64: 4, 32>}, {pipeline_mode = #tpu.pipeline_mode<synchronous>, transform_indices = @transform_11, window_bounds = array<i64: 4, 32>}, {transform_indices = @transform_12, window_bounds = array<i64: 1, 8, 32>}]} {
    %c0 = arith.constant 0 : index
    %c0_0 = arith.constant 0 : index
    %c0_1 = arith.constant 0 : index
    %0 = vector.load %arg1[%c0, %c0_0, %c0_1] : memref<1x8x32xf32, #tpu.memory_space<vmem>>, vector<1x8x32xf32>
    %1 = vector.shape_cast %0 : vector<1x8x32xf32> to vector<8x32xf32>
    %c0_2 = arith.constant 0 : index
    %c0_3 = arith.constant 0 : index
    %c0_4 = arith.constant 0 : index
    %2 = vector.load %arg2[%c0_2, %c0_3, %c0_4] : memref<1x1x8xf32, #tpu.memory_space<vmem>>, vector<1x1x8xf32>
    %3 = vector.shape_cast %2 : vector<1x1x8xf32> to vector<1x8xf32>
    %4 = tpu.transpose %3, [1, 0] : vector<1x8xf32> -> vector<8x1xf32>
    %5 = vector.broadcast %4 : vector<8x1xf32> to vector<8x32xf32>
    %6 = arith.mulf %1, %5 : vector<8x32xf32>
    %c0_5 = arith.constant 0 : index
    %c0_6 = arith.constant 0 : index
    %7 = vector.load %arg11[%c0_5, %c0_6] : memref<4x32xf32, #tpu.memory_space<vmem>>, vector<1x32xf32>
    %8 = vector.shape_cast %7 : vector<1x32xf32> to vector<32xf32>
    %c0_7 = arith.constant 0 : index
    %c0_8 = arith.constant 0 : index
    %9 = vector.load %arg12[%c0_7, %c0_8] : memref<4x32xf32, #tpu.memory_space<vmem>>, vector<1x32xf32>
    %10 = vector.shape_cast %9 : vector<1x32xf32> to vector<32xf32>
    %cst = arith.constant dense<0.000000e+00> : vector<8xf32>
    %11 = vector.multi_reduction <add>, %6, %cst [1] : vector<8x32xf32> to vector<8xf32>
    %12 = vector.shape_cast %11 : vector<8xf32> to vector<8x1xf32>
    %cst_9 = arith.constant 3.200000e+01 : f32
    %13 = vector.broadcast %cst_9 : f32 to vector<8x1xf32>
    %14 = arith.divf %12, %13 : vector<8x1xf32>
    %15 = vector.broadcast %14 : vector<8x1xf32> to vector<8x32xf32>
    %16 = arith.subf %6, %15 : vector<8x32xf32>
    %17 = arith.mulf %16, %16 : vector<8x32xf32>
    %cst_10 = arith.constant dense<0.000000e+00> : vector<8xf32>
    %18 = vector.multi_reduction <add>, %17, %cst_10 [1] : vector<8x32xf32> to vector<8xf32>
    %19 = vector.shape_cast %18 : vector<8xf32> to vector<8x1xf32>
    %cst_11 = arith.constant 3.200000e+01 : f32
    %20 = vector.broadcast %cst_11 : f32 to vector<8x1xf32>
    %21 = arith.divf %19, %20 : vector<8x1xf32>
    %cst_12 = arith.constant 9.99999974E-6 : f32
    %22 = vector.broadcast %cst_12 : f32 to vector<8x1xf32>
    %23 = arith.addf %21, %22 : vector<8x1xf32>
    %24 = math.rsqrt %23 : vector<8x1xf32>
    %25 = vector.broadcast %24 : vector<8x1xf32> to vector<8x32xf32>
    %26 = arith.mulf %16, %25 : vector<8x32xf32>
    %27 = vector.shape_cast %8 : vector<32xf32> to vector<1x32xf32>
    %28 = vector.broadcast %27 : vector<1x32xf32> to vector<8x32xf32>
    %29 = arith.mulf %26, %28 : vector<8x32xf32>
    %30 = vector.shape_cast %10 : vector<32xf32> to vector<1x32xf32>
    %31 = vector.broadcast %30 : vector<1x32xf32> to vector<8x32xf32>
    %32 = arith.addf %29, %31 : vector<8x32xf32>
    %33 = arith.truncf %32 : vector<8x32xf32> to vector<8x32xbf16>
    %c0_13 = arith.constant 0 : index
    %c0_14 = arith.constant 0 : index
    %34 = vector.load %arg3[%c0_13, %c0_14] : memref<32x32xbf16, #tpu.memory_space<vmem>>, vector<32x32xbf16>
    %cst_15 = arith.constant dense<0.000000e+00> : vector<8x32xf32>
    %35 = tpu.matmul %33, %34, %cst_15 {dimension_numbers = #tpu.dot_dimension_numbers<[1], [0], [0], [1], [0, 0, 1, 1], [], []>} : vector<8x32xbf16>, vector<32x32xbf16>, vector<8x32xf32> -> vector<8x32xf32>
    %c0_16 = arith.constant 0 : index
    %c0_17 = arith.constant 0 : index
    %36 = vector.load %arg4[%c0_16, %c0_17] : memref<1x32xf32, #tpu.memory_space<vmem>>, vector<1x32xf32>
    %37 = vector.broadcast %36 : vector<1x32xf32> to vector<8x32xf32>
    %38 = arith.addf %35, %37 : vector<8x32xf32>
    %39 = arith.truncf %6 : vector<8x32xf32> to vector<8x32xbf16>
    %c0_18 = arith.constant 0 : index
    %c0_19 = arith.constant 0 : index
    %40 = vector.load %arg5[%c0_18, %c0_19] : memref<32x64xbf16, #tpu.memory_space<vmem>>, vector<32x64xbf16>
    %cst_20 = arith.constant dense<0.000000e+00> : vector<8x64xf32>
    %41 = tpu.matmul %39, %40, %cst_20 {dimension_numbers = #tpu.dot_dimension_numbers<[1], [0], [0], [1], [0, 0, 1, 1], [], []>} : vector<8x32xbf16>, vector<32x64xbf16>, vector<8x64xf32> -> vector<8x64xf32>
    %c0_21 = arith.constant 0 : index
    %c0_22 = arith.constant 0 : index
    %42 = vector.load %arg6[%c0_21, %c0_22] : memref<1x64xf32, #tpu.memory_space<vmem>>, vector<1x64xf32>
    %43 = vector.broadcast %42 : vector<1x64xf32> to vector<8x64xf32>
    %44 = arith.addf %41, %43 : vector<8x64xf32>
    %45 = vector.extract_strided_slice %38 {offsets = [0, 0], sizes = [8, 8], strides = [1, 1]} : vector<8x32xf32> to vector<8x8xf32>
    %46 = vector.extract_strided_slice %38 {offsets = [0, 8], sizes = [8, 8], strides = [1, 1]} : vector<8x32xf32> to vector<8x8xf32>
    %47 = vector.extract_strided_slice %38 {offsets = [0, 16], sizes = [8, 8], strides = [1, 1]} : vector<8x32xf32> to vector<8x8xf32>
    %48 = vector.extract_strided_slice %38 {offsets = [0, 24], sizes = [8, 8], strides = [1, 1]} : vector<8x32xf32> to vector<8x8xf32>
    %49 = vector.shape_cast %45 : vector<8x8xf32> to vector<1x8x8xf32>
    %50 = vector.shape_cast %46 : vector<8x8xf32> to vector<1x8x8xf32>
    %51 = vector.shape_cast %47 : vector<8x8xf32> to vector<1x8x8xf32>
    %52 = vector.shape_cast %48 : vector<8x8xf32> to vector<1x8x8xf32>
    %53 = tpu.concatenate %49, %50, %51, %52 in 0 : vector<1x8x8xf32>, vector<1x8x8xf32>, vector<1x8x8xf32>, vector<1x8x8xf32> -> vector<4x8x8xf32>
    %54 = vector.extract_strided_slice %44 {offsets = [0, 0], sizes = [8, 8], strides = [1, 1]} : vector<8x64xf32> to vector<8x8xf32>
    %55 = vector.extract_strided_slice %44 {offsets = [0, 8], sizes = [8, 8], strides = [1, 1]} : vector<8x64xf32> to vector<8x8xf32>
    %56 = vector.extract_strided_slice %44 {offsets = [0, 16], sizes = [8, 8], strides = [1, 1]} : vector<8x64xf32> to vector<8x8xf32>
    %57 = vector.extract_strided_slice %44 {offsets = [0, 24], sizes = [8, 8], strides = [1, 1]} : vector<8x64xf32> to vector<8x8xf32>
    %58 = vector.shape_cast %54 : vector<8x8xf32> to vector<1x8x8xf32>
    %59 = vector.shape_cast %55 : vector<8x8xf32> to vector<1x8x8xf32>
    %60 = vector.shape_cast %56 : vector<8x8xf32> to vector<1x8x8xf32>
    %61 = vector.shape_cast %57 : vector<8x8xf32> to vector<1x8x8xf32>
    %62 = tpu.concatenate %58, %59, %60, %61 in 0 : vector<1x8x8xf32>, vector<1x8x8xf32>, vector<1x8x8xf32>, vector<1x8x8xf32> -> vector<4x8x8xf32>
    %63 = vector.extract_strided_slice %44 {offsets = [0, 32], sizes = [8, 8], strides = [1, 1]} : vector<8x64xf32> to vector<8x8xf32>
    %64 = vector.extract_strided_slice %44 {offsets = [0, 40], sizes = [8, 8], strides = [1, 1]} : vector<8x64xf32> to vector<8x8xf32>
    %65 = vector.extract_strided_slice %44 {offsets = [0, 48], sizes = [8, 8], strides = [1, 1]} : vector<8x64xf32> to vector<8x8xf32>
    %66 = vector.extract_strided_slice %44 {offsets = [0, 56], sizes = [8, 8], strides = [1, 1]} : vector<8x64xf32> to vector<8x8xf32>
    %67 = vector.shape_cast %63 : vector<8x8xf32> to vector<1x8x8xf32>
    %68 = vector.shape_cast %64 : vector<8x8xf32> to vector<1x8x8xf32>
    %69 = vector.shape_cast %65 : vector<8x8xf32> to vector<1x8x8xf32>
    %70 = vector.shape_cast %66 : vector<8x8xf32> to vector<1x8x8xf32>
    %71 = tpu.concatenate %67, %68, %69, %70 in 0 : vector<1x8x8xf32>, vector<1x8x8xf32>, vector<1x8x8xf32>, vector<1x8x8xf32> -> vector<4x8x8xf32>
    %cst_23 = arith.constant 0.176776692 : f32
    %72 = vector.broadcast %cst_23 : f32 to vector<4x8x8xf32>
    %73 = arith.mulf %53, %72 : vector<4x8x8xf32>
    %74 = arith.truncf %73 : vector<4x8x8xf32> to vector<4x8x8xbf16>
    %75 = arith.truncf %62 : vector<4x8x8xf32> to vector<4x8x8xbf16>
    %76 = arith.truncf %71 : vector<4x8x8xf32> to vector<4x8x8xbf16>
    "tpu.trace_start"() <{level = 10 : i32, message = "hqd,hkd->hqk"}> : () -> ()
    %cst_24 = arith.constant dense<0.000000e+00> : vector<4x8x8xf32>
    %77 = tpu.matmul %74, %75, %cst_24 {dimension_numbers = #tpu.dot_dimension_numbers<[2], [2], [1], [1], [0, 0, 0, 1, 1, 1], [0], [0]>} : vector<4x8x8xbf16>, vector<4x8x8xbf16>, vector<4x8x8xf32> -> vector<4x8x8xf32>
    "tpu.trace_stop"() : () -> ()
    %cst_25 = arith.constant dense<0.000000e+00> : vector<8xf32>
    %78 = vector.multi_reduction <add>, %6, %cst_25 [1] : vector<8x32xf32> to vector<8xf32>
    %79 = vector.shape_cast %78 : vector<8xf32> to vector<8x1xf32>
    %80 = math.absf %79 : vector<8x1xf32>
    %cst_26 = arith.constant 0.000000e+00 : f32
    %81 = vector.broadcast %cst_26 : f32 to vector<8x1xf32>
    %82 = arith.cmpf ogt, %80, %81 : vector<8x1xf32>
    %83 = arith.extui %82 : vector<8x1xi1> to vector<8x1xi32>
    %84 = arith.sitofp %83 : vector<8x1xi32> to vector<8x1xf32>
    %85 = tpu.transpose %84, [1, 0] : vector<8x1xf32> -> vector<1x8xf32>
    %cst_27 = arith.constant 0.000000e+00 : f32
    %86 = vector.broadcast %cst_27 : f32 to vector<1x8xf32>
    %87 = arith.cmpf ogt, %85, %86 : vector<1x8xf32>
    %cst_28 = arith.constant -4.2949673E+9 : f32
    %88 = vector.shape_cast %87 : vector<1x8xi1> to vector<1x1x8xi1>
    %89 = vector.broadcast %88 : vector<1x1x8xi1> to vector<4x8x8xi1>
    %90 = vector.broadcast %cst_28 : f32 to vector<4x8x8xf32>
    %91 = arith.select %89, %77, %90 : vector<4x8x8xi1>, vector<4x8x8xf32>
    %92 = tpu.iota {dimensions = array<i32: 0>} : vector<8x8xi32>
    %93 = tpu.iota {dimensions = array<i32: 1>} : vector<8x8xi32>
    %94 = arith.cmpi sle, %93, %92 : vector<8x8xi32>
    %cst_29 = arith.constant -4.2949673E+9 : f32
    %95 = vector.shape_cast %94 : vector<8x8xi1> to vector<1x8x8xi1>
    %96 = vector.broadcast %95 : vector<1x8x8xi1> to vector<4x8x8xi1>
    %97 = vector.broadcast %cst_29 : f32 to vector<4x8x8xf32>
    %98 = arith.select %96, %91, %97 : vector<4x8x8xi1>, vector<4x8x8xf32>
    %cst_30 = arith.constant dense<0xFF800000> : vector<4x8xf32>
    %99 = vector.multi_reduction <maximumf>, %98, %cst_30 [2] : vector<4x8x8xf32> to vector<4x8xf32>
    %100 = vector.shape_cast %99 : vector<4x8xf32> to vector<4x8x1xf32>
    %101 = vector.broadcast %100 : vector<4x8x1xf32> to vector<4x8x8xf32>
    %102 = arith.subf %98, %101 : vector<4x8x8xf32>
    %103 = math.exp %102 : vector<4x8x8xf32>
    %cst_31 = arith.constant dense<0.000000e+00> : vector<4x8xf32>
    %104 = vector.multi_reduction <add>, %103, %cst_31 [2] : vector<4x8x8xf32> to vector<4x8xf32>
    %105 = vector.shape_cast %104 : vector<4x8xf32> to vector<4x8x1xf32>
    %106 = tpu.reciprocal %105 {approx = true} : vector<4x8x1xf32> -> vector<4x8x1xf32>
    %107 = vector.broadcast %106 : vector<4x8x1xf32> to vector<4x8x8xf32>
    %108 = arith.mulf %103, %107 : vector<4x8x8xf32>
    %109 = arith.truncf %108 : vector<4x8x8xf32> to vector<4x8x8xbf16>
    "tpu.trace_start"() <{level = 10 : i32, message = "hqk,hkd->hqd"}> : () -> ()
    %cst_32 = arith.constant dense<0.000000e+00> : vector<4x8x8xf32>
    %110 = tpu.matmul %109, %76, %cst_32 {dimension_numbers = #tpu.dot_dimension_numbers<[2], [1], [1], [2], [0, 0, 0, 1, 1, 2], [0], [0]>} : vector<4x8x8xbf16>, vector<4x8x8xbf16>, vector<4x8x8xf32> -> vector<4x8x8xf32>
    "tpu.trace_stop"() : () -> ()
    %111 = vector.extract_strided_slice %110 {offsets = [0, 0, 0], sizes = [1, 8, 8], strides = [1, 1, 1]} : vector<4x8x8xf32> to vector<1x8x8xf32>
    %112 = vector.shape_cast %111 : vector<1x8x8xf32> to vector<8x8xf32>
    %113 = vector.extract_strided_slice %110 {offsets = [1, 0, 0], sizes = [1, 8, 8], strides = [1, 1, 1]} : vector<4x8x8xf32> to vector<1x8x8xf32>
    %114 = vector.shape_cast %113 : vector<1x8x8xf32> to vector<8x8xf32>
    %115 = vector.extract_strided_slice %110 {offsets = [2, 0, 0], sizes = [1, 8, 8], strides = [1, 1, 1]} : vector<4x8x8xf32> to vector<1x8x8xf32>
    %116 = vector.shape_cast %115 : vector<1x8x8xf32> to vector<8x8xf32>
    %117 = vector.extract_strided_slice %110 {offsets = [3, 0, 0], sizes = [1, 8, 8], strides = [1, 1, 1]} : vector<4x8x8xf32> to vector<1x8x8xf32>
    %118 = vector.shape_cast %117 : vector<1x8x8xf32> to vector<8x8xf32>
    %119 = tpu.concatenate %112, %114, %116, %118 in 1 : vector<8x8xf32>, vector<8x8xf32>, vector<8x8xf32>, vector<8x8xf32> -> vector<8x32xf32>
    %cst_33 = arith.constant dense<0.000000e+00> : vector<8xf32>
    %120 = vector.multi_reduction <add>, %32, %cst_33 [1] : vector<8x32xf32> to vector<8xf32>
    %121 = vector.shape_cast %120 : vector<8xf32> to vector<8x1xf32>
    %122 = math.absf %121 : vector<8x1xf32>
    %cst_34 = arith.constant 0.000000e+00 : f32
    %123 = vector.broadcast %cst_34 : f32 to vector<8x1xf32>
    %124 = arith.cmpf ogt, %122, %123 : vector<8x1xf32>
    %125 = arith.extui %124 : vector<8x1xi1> to vector<8x1xi32>
    %126 = arith.sitofp %125 : vector<8x1xi32> to vector<8x1xf32>
    %127 = vector.broadcast %126 : vector<8x1xf32> to vector<8x32xf32>
    %128 = arith.mulf %119, %127 : vector<8x32xf32>
    %129 = arith.addf %128, %32 : vector<8x32xf32>
    %130 = arith.addf %6, %129 : vector<8x32xf32>
    %c1 = arith.constant 1 : index
    %c0_35 = arith.constant 0 : index
    %131 = vector.load %arg11[%c1, %c0_35] : memref<4x32xf32, #tpu.memory_space<vmem>>, vector<1x32xf32>
    %132 = vector.shape_cast %131 : vector<1x32xf32> to vector<32xf32>
    %c1_36 = arith.constant 1 : index
    %c0_37 = arith.constant 0 : index
    %133 = vector.load %arg12[%c1_36, %c0_37] : memref<4x32xf32, #tpu.memory_space<vmem>>, vector<1x32xf32>
    %134 = vector.shape_cast %133 : vector<1x32xf32> to vector<32xf32>
    %cst_38 = arith.constant dense<0.000000e+00> : vector<8xf32>
    %135 = vector.multi_reduction <add>, %130, %cst_38 [1] : vector<8x32xf32> to vector<8xf32>
    %136 = vector.shape_cast %135 : vector<8xf32> to vector<8x1xf32>
    %cst_39 = arith.constant 3.200000e+01 : f32
    %137 = vector.broadcast %cst_39 : f32 to vector<8x1xf32>
    %138 = arith.divf %136, %137 : vector<8x1xf32>
    %139 = vector.broadcast %138 : vector<8x1xf32> to vector<8x32xf32>
    %140 = arith.subf %130, %139 : vector<8x32xf32>
    %141 = arith.mulf %140, %140 : vector<8x32xf32>
    %cst_40 = arith.constant dense<0.000000e+00> : vector<8xf32>
    %142 = vector.multi_reduction <add>, %141, %cst_40 [1] : vector<8x32xf32> to vector<8xf32>
    %143 = vector.shape_cast %142 : vector<8xf32> to vector<8x1xf32>
    %cst_41 = arith.constant 3.200000e+01 : f32
    %144 = vector.broadcast %cst_41 : f32 to vector<8x1xf32>
    %145 = arith.divf %143, %144 : vector<8x1xf32>
    %cst_42 = arith.constant 9.99999974E-6 : f32
    %146 = vector.broadcast %cst_42 : f32 to vector<8x1xf32>
    %147 = arith.addf %145, %146 : vector<8x1xf32>
    %148 = math.rsqrt %147 : vector<8x1xf32>
    %149 = vector.broadcast %148 : vector<8x1xf32> to vector<8x32xf32>
    %150 = arith.mulf %140, %149 : vector<8x32xf32>
    %151 = vector.shape_cast %132 : vector<32xf32> to vector<1x32xf32>
    %152 = vector.broadcast %151 : vector<1x32xf32> to vector<8x32xf32>
    %153 = arith.mulf %150, %152 : vector<8x32xf32>
    %154 = vector.shape_cast %134 : vector<32xf32> to vector<1x32xf32>
    %155 = vector.broadcast %154 : vector<1x32xf32> to vector<8x32xf32>
    %156 = arith.addf %153, %155 : vector<8x32xf32>
    %157 = arith.truncf %156 : vector<8x32xf32> to vector<8x32xbf16>
    %c0_43 = arith.constant 0 : index
    %c0_44 = arith.constant 0 : index
    %158 = vector.load %arg7[%c0_43, %c0_44] : memref<32x32xbf16, #tpu.memory_space<vmem>>, vector<32x32xbf16>
    %cst_45 = arith.constant dense<0.000000e+00> : vector<8x32xf32>
    %159 = tpu.matmul %157, %158, %cst_45 {dimension_numbers = #tpu.dot_dimension_numbers<[1], [0], [0], [1], [0, 0, 1, 1], [], []>} : vector<8x32xbf16>, vector<32x32xbf16>, vector<8x32xf32> -> vector<8x32xf32>
    %c0_46 = arith.constant 0 : index
    %c0_47 = arith.constant 0 : index
    %160 = vector.load %arg8[%c0_46, %c0_47] : memref<1x32xf32, #tpu.memory_space<vmem>>, vector<1x32xf32>
    %161 = vector.broadcast %160 : vector<1x32xf32> to vector<8x32xf32>
    %162 = arith.addf %159, %161 : vector<8x32xf32>
    %cst_48 = arith.constant 0.000000e+00 : f32
    %163 = vector.broadcast %cst_48 : f32 to vector<8x32xf32>
    %164 = arith.maximumf %162, %163 : vector<8x32xf32>
    %165 = arith.truncf %164 : vector<8x32xf32> to vector<8x32xbf16>
    %c0_49 = arith.constant 0 : index
    %c0_50 = arith.constant 0 : index
    %166 = vector.load %arg9[%c0_49, %c0_50] : memref<32x32xbf16, #tpu.memory_space<vmem>>, vector<32x32xbf16>
    %cst_51 = arith.constant dense<0.000000e+00> : vector<8x32xf32>
    %167 = tpu.matmul %165, %166, %cst_51 {dimension_numbers = #tpu.dot_dimension_numbers<[1], [0], [0], [1], [0, 0, 1, 1], [], []>} : vector<8x32xbf16>, vector<32x32xbf16>, vector<8x32xf32> -> vector<8x32xf32>
    %c0_52 = arith.constant 0 : index
    %c0_53 = arith.constant 0 : index
    %168 = vector.load %arg10[%c0_52, %c0_53] : memref<1x32xf32, #tpu.memory_space<vmem>>, vector<1x32xf32>
    %169 = vector.broadcast %168 : vector<1x32xf32> to vector<8x32xf32>
    %170 = arith.addf %167, %169 : vector<8x32xf32>
    %171 = arith.addf %170, %156 : vector<8x32xf32>
    %c2 = arith.constant 2 : index
    %c0_54 = arith.constant 0 : index
    %172 = vector.load %arg11[%c2, %c0_54] : memref<4x32xf32, #tpu.memory_space<vmem>>, vector<1x32xf32>
    %173 = vector.shape_cast %172 : vector<1x32xf32> to vector<32xf32>
    %c2_55 = arith.constant 2 : index
    %c0_56 = arith.constant 0 : index
    %174 = vector.load %arg12[%c2_55, %c0_56] : memref<4x32xf32, #tpu.memory_space<vmem>>, vector<1x32xf32>
    %175 = vector.shape_cast %174 : vector<1x32xf32> to vector<32xf32>
    %cst_57 = arith.constant dense<0.000000e+00> : vector<8xf32>
    %176 = vector.multi_reduction <add>, %171, %cst_57 [1] : vector<8x32xf32> to vector<8xf32>
    %177 = vector.shape_cast %176 : vector<8xf32> to vector<8x1xf32>
    %cst_58 = arith.constant 3.200000e+01 : f32
    %178 = vector.broadcast %cst_58 : f32 to vector<8x1xf32>
    %179 = arith.divf %177, %178 : vector<8x1xf32>
    %180 = vector.broadcast %179 : vector<8x1xf32> to vector<8x32xf32>
    %181 = arith.subf %171, %180 : vector<8x32xf32>
    %182 = arith.mulf %181, %181 : vector<8x32xf32>
    %cst_59 = arith.constant dense<0.000000e+00> : vector<8xf32>
    %183 = vector.multi_reduction <add>, %182, %cst_59 [1] : vector<8x32xf32> to vector<8xf32>
    %184 = vector.shape_cast %183 : vector<8xf32> to vector<8x1xf32>
    %cst_60 = arith.constant 3.200000e+01 : f32
    %185 = vector.broadcast %cst_60 : f32 to vector<8x1xf32>
    %186 = arith.divf %184, %185 : vector<8x1xf32>
    %cst_61 = arith.constant 9.99999974E-6 : f32
    %187 = vector.broadcast %cst_61 : f32 to vector<8x1xf32>
    %188 = arith.addf %186, %187 : vector<8x1xf32>
    %189 = math.rsqrt %188 : vector<8x1xf32>
    %190 = vector.broadcast %189 : vector<8x1xf32> to vector<8x32xf32>
    %191 = arith.mulf %181, %190 : vector<8x32xf32>
    %192 = vector.shape_cast %173 : vector<32xf32> to vector<1x32xf32>
    %193 = vector.broadcast %192 : vector<1x32xf32> to vector<8x32xf32>
    %194 = arith.mulf %191, %193 : vector<8x32xf32>
    %195 = vector.shape_cast %175 : vector<32xf32> to vector<1x32xf32>
    %196 = vector.broadcast %195 : vector<1x32xf32> to vector<8x32xf32>
    %197 = arith.addf %194, %196 : vector<8x32xf32>
    %198 = vector.broadcast %4 : vector<8x1xf32> to vector<8x32xf32>
    %199 = arith.mulf %197, %198 : vector<8x32xf32>
    %200 = arith.addf %130, %199 : vector<8x32xf32>
    %c3 = arith.constant 3 : index
    %c0_62 = arith.constant 0 : index
    %201 = vector.load %arg11[%c3, %c0_62] : memref<4x32xf32, #tpu.memory_space<vmem>>, vector<1x32xf32>
    %202 = vector.shape_cast %201 : vector<1x32xf32> to vector<32xf32>
    %c3_63 = arith.constant 3 : index
    %c0_64 = arith.constant 0 : index
    %203 = vector.load %arg12[%c3_63, %c0_64] : memref<4x32xf32, #tpu.memory_space<vmem>>, vector<1x32xf32>
    %204 = vector.shape_cast %203 : vector<1x32xf32> to vector<32xf32>
    %cst_65 = arith.constant dense<0.000000e+00> : vector<8xf32>
    %205 = vector.multi_reduction <add>, %200, %cst_65 [1] : vector<8x32xf32> to vector<8xf32>
    %206 = vector.shape_cast %205 : vector<8xf32> to vector<8x1xf32>
    %cst_66 = arith.constant 3.200000e+01 : f32
    %207 = vector.broadcast %cst_66 : f32 to vector<8x1xf32>
    %208 = arith.divf %206, %207 : vector<8x1xf32>
    %209 = vector.broadcast %208 : vector<8x1xf32> to vector<8x32xf32>
    %210 = arith.subf %200, %209 : vector<8x32xf32>
    %211 = arith.mulf %210, %210 : vector<8x32xf32>
    %cst_67 = arith.constant dense<0.000000e+00> : vector<8xf32>
    %212 = vector.multi_reduction <add>, %211, %cst_67 [1] : vector<8x32xf32> to vector<8xf32>
    %213 = vector.shape_cast %212 : vector<8xf32> to vector<8x1xf32>
    %cst_68 = arith.constant 3.200000e+01 : f32
    %214 = vector.broadcast %cst_68 : f32 to vector<8x1xf32>
    %215 = arith.divf %213, %214 : vector<8x1xf32>
    %cst_69 = arith.constant 9.99999974E-6 : f32
    %216 = vector.broadcast %cst_69 : f32 to vector<8x1xf32>
    %217 = arith.addf %215, %216 : vector<8x1xf32>
    %218 = math.rsqrt %217 : vector<8x1xf32>
    %219 = vector.broadcast %218 : vector<8x1xf32> to vector<8x32xf32>
    %220 = arith.mulf %210, %219 : vector<8x32xf32>
    %221 = vector.shape_cast %202 : vector<32xf32> to vector<1x32xf32>
    %222 = vector.broadcast %221 : vector<1x32xf32> to vector<8x32xf32>
    %223 = arith.mulf %220, %222 : vector<8x32xf32>
    %224 = vector.shape_cast %204 : vector<32xf32> to vector<1x32xf32>
    %225 = vector.broadcast %224 : vector<1x32xf32> to vector<8x32xf32>
    %226 = arith.addf %223, %225 : vector<8x32xf32>
    %c0_70 = arith.constant 0 : index
    %c0_71 = arith.constant 0 : index
    %c0_72 = arith.constant 0 : index
    %227 = vector.load %arg13[%c0_70, %c0_71, %c0_72] : memref<1x8x32xf32, #tpu.memory_space<vmem>>, vector<1x8x32xf32>
    %228 = vector.shape_cast %227 : vector<1x8x32xf32> to vector<8x32xf32>
    %229 = vector.shape_cast %226 : vector<8x32xf32> to vector<1x8x32xf32>
    tpu.vector_store %arg13[%c0_70, %c0_71, %c0_72], %229 {strides = array<i32>} : memref<1x8x32xf32, #tpu.memory_space<vmem>>, vector<1x8x32xf32>,
    return
  }
  func.func @transform_0(%arg0: i32) -> (i32, i32, i32) {
    %c0_i32 = arith.constant 0 : i32
    %c0_i32_0 = arith.constant 0 : i32
    %c0_i32_1 = arith.constant 0 : i32
    return %arg0, %c0_i32, %c0_i32_0 : i32, i32, i32
  }
  func.func @transform_1(%arg0: i32) -> (i32, i32, i32) {
    %c0_i32 = arith.constant 0 : i32
    %c0_i32_0 = arith.constant 0 : i32
    %c0_i32_1 = arith.constant 0 : i32
    return %arg0, %c0_i32, %c0_i32_0 : i32, i32, i32
  }
  func.func @transform_2(%arg0: i32) -> (i32, i32) {
    %c0_i32 = arith.constant 0 : i32
    %c0_i32_0 = arith.constant 0 : i32
    %c0_i32_1 = arith.constant 0 : i32
    return %c0_i32, %c0_i32_0 : i32, i32
  }
  func.func @transform_3(%arg0: i32) -> (i32, i32) {
    %c0_i32 = arith.constant 0 : i32
    %c0_i32_0 = arith.constant 0 : i32
    %c0_i32_1 = arith.constant 0 : i32
    return %c0_i32, %c0_i32_0 : i32, i32
  }
  func.func @transform_4(%arg0: i32) -> (i32, i32) {
    %c0_i32 = arith.constant 0 : i32
    %c0_i32_0 = arith.constant 0 : i32
    %c0_i32_1 = arith.constant 0 : i32
    return %c0_i32, %c0_i32_0 : i32, i32
  }
  func.func @transform_5(%arg0: i32) -> (i32, i32) {
    %c0_i32 = arith.constant 0 : i32
    %c0_i32_0 = arith.constant 0 : i32
    %c0_i32_1 = arith.constant 0 : i32
    return %c0_i32, %c0_i32_0 : i32, i32
  }
  func.func @transform_6(%arg0: i32) -> (i32, i32) {
    %c0_i32 = arith.constant 0 : i32
    %c0_i32_0 = arith.constant 0 : i32
    %c0_i32_1 = arith.constant 0 : i32
    return %c0_i32, %c0_i32_0 : i32, i32
  }
  func.func @transform_7(%arg0: i32) -> (i32, i32) {
    %c0_i32 = arith.constant 0 : i32
    %c0_i32_0 = arith.constant 0 : i32
    %c0_i32_1 = arith.constant 0 : i32
    return %c0_i32, %c0_i32_0 : i32, i32
  }
  func.func @transform_8(%arg0: i32) -> (i32, i32) {
    %c0_i32 = arith.constant 0 : i32
    %c0_i32_0 = arith.constant 0 : i32
    %c0_i32_1 = arith.constant 0 : i32
    return %c0_i32, %c0_i32_0 : i32, i32
  }
  func.func @transform_9(%arg0: i32) -> (i32, i32) {
    %c0_i32 = arith.constant 0 : i32
    %c0_i32_0 = arith.constant 0 : i32
    %c0_i32_1 = arith.constant 0 : i32
    return %c0_i32, %c0_i32_0 : i32, i32
  }
  func.func @transform_10(%arg0: i32) -> (i32, i32) {
    %c0_i32 = arith.constant 0 : i32
    %c0_i32_0 = arith.constant 0 : i32
    %c0_i32_1 = arith.constant 0 : i32
    return %c0_i32, %c0_i32_0 : i32, i32
  }
  func.func @transform_11(%arg0: i32) -> (i32, i32) {
    %c0_i32 = arith.constant 0 : i32
    %c0_i32_0 = arith.constant 0 : i32
    %c0_i32_1 = arith.constant 0 : i32
    return %c0_i32, %c0_i32_0 : i32, i32
  }
  func.func @transform_12(%arg0: i32) -> (i32, i32, i32) {
    %c0_i32 = arith.constant 0 : i32
    %c0_i32_0 = arith.constant 0 : i32
    %c0_i32_1 = arith.constant 0 : i32
    return %arg0, %c0_i32, %c0_i32_0 : i32, i32, i32
  }
}

</mosaic_0001>

<llo_original>
// kernel: tpu_custom_call.1
$region0: #{tpu_custom_call.1}
  #allocation0 [shape = 'u32[]', space=smem, size = 0x4, offset = 0x4, fixed_abs, tag = 'smem constant byte address 0x4 - core index']
  #allocation1 [shape = 'u32[144,128]{1,0:T(1,128)}', space=vmem, size = 0x12000, scoped, tag = 'internal scratch']
  %s0 = inlined_call_operand.hbm [shape: f32[2,8,32], index: 0, kind: input, shape index: {}]
  %s1 = inlined_call_operand.vmem [shape: f32[2,1,8], index: 1, kind: input, shape index: {}]
  %s2 = inlined_call_operand.hbm [shape: bf16[32,32], index: 2, kind: input, shape index: {}]
  %s3 = inlined_call_operand.hbm [shape: f32[1,32], index: 3, kind: input, shape index: {}]
  %s4 = inlined_call_operand.hbm [shape: bf16[32,64], index: 4, kind: input, shape index: {}]
  %s5 = inlined_call_operand.hbm [shape: f32[1,64], index: 5, kind: input, shape index: {}]
  %s6 = inlined_call_operand.vmem [shape: bf16[32,32], index: 6, kind: input, shape index: {}]
  %s7 = inlined_call_operand.hbm [shape: f32[1,32], index: 7, kind: input, shape index: {}]
  %s8 = inlined_call_operand.hbm [shape: bf16[32,32], index: 8, kind: input, shape index: {}]
  %s9 = inlined_call_operand.vmem [shape: f32[1,32], index: 9, kind: input, shape index: {}]
  %s10 = inlined_call_operand.vmem [shape: f32[4,32], index: 10, kind: input, shape index: {}]
  %s11 = inlined_call_operand.vmem [shape: f32[4,32], index: 11, kind: input, shape index: {}]
  %s12 = inlined_call_operand.hbm [shape: f32[2,8,32], index: 12, kind: output, shape index: {}]
  %s13 = sld [smem:[#allocation0]]
  $region109: #{tpu_custom_call.1} parent=0
    _
  %s15 = ssub.s32 1, %s13
  %s16 = scalar_select 0, %s15, %s13
  $region1: #{tpu_custom_call.1} parent=0
    #allocation2 [shape = 'u8[8192]{0}', space=vmem, size = 0x2000, scoped, tag = 'input window, operand 0']
    #allocation3 [shape = 's32[2]{0}', space=sflag, size = 0x8, scoped, tag = 'scoped memory for tpu_custom_call.1']
    #allocation4 [shape = 's32[2]{0}', space=sflag, size = 0x8, scoped, tag = 'scoped memory for tpu_custom_call.1']
    #allocation5 [shape = 'u8[8192]{0}', space=vmem, size = 0x2000, scoped, tag = 'input window, operand 2, single buffered']
    #allocation6 [shape = 's32[1]{0}', space=sflag, size = 0x4, scoped, tag = 'scoped memory for tpu_custom_call.1']
    #allocation7 [shape = 'u8[512]{0}', space=vmem, size = 0x400, scoped, tag = 'input window, operand 3, single buffered']
    #allocation8 [shape = 'u8[8192]{0}', space=vmem, size = 0x2000, scoped, tag = 'input window, operand 4, single buffered']
    #allocation9 [shape = 's32[1]{0}', space=sflag, size = 0x4, scoped, tag = 'scoped memory for tpu_custom_call.1']
    #allocation10 [shape = 'u8[512]{0}', space=vmem, size = 0x400, scoped, tag = 'input window, operand 5, single buffered']
    #allocation11 [shape = 'u8[512]{0}', space=vmem, size = 0x400, scoped, tag = 'input window, operand 7, single buffered']
    #allocation12 [shape = 's32[1]{0}', space=sflag, size = 0x4, scoped, tag = 'scoped memory for tpu_custom_call.1']
    #allocation13 [shape = 'u8[8192]{0}', space=vmem, size = 0x2000, scoped, tag = 'input window, operand 8, single buffered']
    #allocation14 [shape = 'u8[8192]{0}', space=vmem, size = 0x2000, scoped, tag = 'output window, operand 0']
    %17 = vsyncpa [#allocation3], 0
    %s18 = scalar_lea.sflag [#allocation3], 1
    %19 = vsyncpa %s18, 0
    %20 = vsyncpa [#allocation6], 0
    %21 = vsyncpa [#allocation9], 0
    %22 = vsyncpa [#allocation12], 0
    %23 = vsyncpa [#allocation4], 0
    %s24 = scalar_lea.sflag [#allocation4], 1
    %25 = vsyncpa %s24, 0
    loop: start=0, step=1, limit=4
    $region2: #{tpu_custom_call.1} parent=1 // loop_pre_header
      _
    $region3: #{tpu_custom_call.1} parent=1 // loop_header
      %s27 = sphi 0, %s31
      %p28 = scmp.ge.s32.totalorder %s27, 4
      %s37 = sphi 0, %s39
      %s40 = sphi 0, %s37
      %s41 = sphi 0, %s40
      %s57 = sphi 0, %s41
      %s63 = sphi 0, %s65
      %s66 = sphi 0, %s63
      %s67 = sphi 0, %s66
      %s83 = sphi 0, %s67
      %s87 = sphi 0, %s87
      %s89 = sphi 0, %s87
      %s90 = sphi 0, %s89
      %s104 = sphi 0, %s90
      %s108 = sphi 0, %s108
      %s110 = sphi 0, %s108
      %s111 = sphi 0, %s110
      %s125 = sphi 0, %s111
      %s129 = sphi 0, %s129
      %s131 = sphi 0, %s129
      %s132 = sphi 0, %s131
      %s146 = sphi 0, %s132
      %s150 = sphi 0, %s150
      %s152 = sphi 0, %s150
      %s153 = sphi 0, %s152
      %s167 = sphi 0, %s153
      %s171 = sphi 0, %s171
      %s173 = sphi 0, %s171
      %s174 = sphi 0, %s173
      %s188 = sphi 0, %s174
      %s192 = sphi 0, %s192
      %s194 = sphi 0, %s192
      %s195 = sphi 0, %s194
      %s209 = sphi 0, %s195
      %s213 = sphi 0, %s213
      %s215 = sphi 0, %s213
      %s216 = sphi 0, %s215
      %s230 = sphi 0, %s216
      %s234 = sphi 0, %s234
      %s236 = sphi 0, %s234
      %s237 = sphi 0, %s236
      %s251 = sphi 0, %s237
      %s255 = sphi 0, %s255
      %s257 = sphi 0, %s255
      %s258 = sphi 0, %s257
      %s272 = sphi 0, %s258
      %s276 = sphi 0, %s276
      %s278 = sphi 0, %s276
      %s279 = sphi 0, %s278
      %s293 = sphi 0, %s279
      %s299 = sphi 0, %s301
      %s302 = sphi 0, %s299
      %s303 = sphi 0, %s302
      %s319 = sphi 0, %s303
    $region4: #{tpu_custom_call.1} parent=1 // loop_header_branch
      %30 = sbr.rel (%p28) target = $region8
    $region5: #{tpu_custom_call.1} parent=1 // loop_body
      %s32 = ssub.s32 %s27, 1
      %s33 = ssub.s32 %s27, 2
      %s34 = sadd.s32 %s27, 1
      %s35 = ssub.s32 %s27, %s34
      %p36 = scmp.eq.s32.totalorder %s35, 0
      %s38 = sadd.s32 %s37, 1
      %s39 = scalar_select %p36, %s37, %s38
      %p42 = pneg %p36
      %p43 = scmp.eq.s32.totalorder %s27, 1
      %p44 = por %p42, %p43
      %p45 = scmp.ne.s32.totalorder %s37, %s40
      %p46 = scmp.eq.s32.totalorder %s27, 0
      %p47 = por %p45, %p46
      %p48 = scmp.ne.s32.totalorder %s37, %s40
      %p49 = scmp.eq.s32.totalorder %s32, 1
      %p50 = por %p48, %p49
      %p51 = scmp.ne.s32.totalorder %s40, %s41
      %p52 = scmp.eq.s32.totalorder %s32, 0
      %p53 = por %p51, %p52
      %p54 = scmp.ne.s32.totalorder %s40, %s41
      %p55 = scmp.eq.s32.totalorder %s33, 1
      %p56 = por %p54, %p55
      %p58 = scmp.ne.s32.totalorder %s41, %s57
      %p59 = scmp.eq.s32.totalorder %s33, 0
      %p60 = por %p58, %p59
      %s61 = ssub.s32 %s27, %s34
      %p62 = scmp.eq.s32.totalorder %s61, 0
      %s64 = sadd.s32 %s63, 1
      %s65 = scalar_select %p62, %s63, %s64
      %p68 = pneg %p62
      %p69 = scmp.eq.s32.totalorder %s27, 1
      %p70 = por %p68, %p69
      %p71 = scmp.ne.s32.totalorder %s63, %s66
      %p72 = scmp.eq.s32.totalorder %s27, 0
      %p73 = por %p71, %p72
      %p74 = scmp.ne.s32.totalorder %s63, %s66
      %p75 = scmp.eq.s32.totalorder %s32, 1
      %p76 = por %p74, %p75
      %p77 = scmp.ne.s32.totalorder %s66, %s67
      %p78 = scmp.eq.s32.totalorder %s32, 0
      %p79 = por %p77, %p78
      %p80 = scmp.ne.s32.totalorder %s66, %s67
      %p81 = scmp.eq.s32.totalorder %s33, 1
      %p82 = por %p80, %p81
      %p84 = scmp.ne.s32.totalorder %s67, %s83
      %p85 = scmp.eq.s32.totalorder %s33, 0
      %p86 = por %p84, %p85
      %s88 = sadd.s32 %s87, 1
      %p91 = scmp.eq.s32.totalorder %s27, 1
      %p92 = scmp.ne.s32.totalorder %s87, %s89
      %p93 = scmp.eq.s32.totalorder %s27, 0
      %p94 = por %p92, %p93
      %p95 = scmp.ne.s32.totalorder %s87, %s89
      %p96 = scmp.eq.s32.totalorder %s32, 1
      %p97 = por %p95, %p96
      %p98 = scmp.ne.s32.totalorder %s89, %s90
      %p99 = scmp.eq.s32.totalorder %s32, 0
      %p100 = por %p98, %p99
      %p101 = scmp.ne.s32.totalorder %s89, %s90
      %p102 = scmp.eq.s32.totalorder %s33, 1
      %p103 = por %p101, %p102
      %p105 = scmp.ne.s32.totalorder %s90, %s104
      %p106 = scmp.eq.s32.totalorder %s33, 0
      %p107 = por %p105, %p106
      %s109 = sadd.s32 %s108, 1
      %p112 = scmp.eq.s32.totalorder %s27, 1
      %p113 = scmp.ne.s32.totalorder %s108, %s110
      %p114 = scmp.eq.s32.totalorder %s27, 0
      %p115 = por %p113, %p114
      %p116 = scmp.ne.s32.totalorder %s108, %s110
      %p117 = scmp.eq.s32.totalorder %s32, 1
      %p118 = por %p116, %p117
      %p119 = scmp.ne.s32.totalorder %s110, %s111
      %p120 = scmp.eq.s32.totalorder %s32, 0
      %p121 = por %p119, %p120
      %p122 = scmp.ne.s32.totalorder %s110, %s111
      %p123 = scmp.eq.s32.totalorder %s33, 1
      %p124 = por %p122, %p123
      %p126 = scmp.ne.s32.totalorder %s111, %s125
      %p127 = scmp.eq.s32.totalorder %s33, 0
      %p128 = por %p126, %p127
      %s130 = sadd.s32 %s129, 1
      %p133 = scmp.eq.s32.totalorder %s27, 1
      %p134 = scmp.ne.s32.totalorder %s129, %s131
      %p135 = scmp.eq.s32.totalorder %s27, 0
      %p136 = por %p134, %p135
      %p137 = scmp.ne.s32.totalorder %s129, %s131
      %p138 = scmp.eq.s32.totalorder %s32, 1
      %p139 = por %p137, %p138
      %p140 = scmp.ne.s32.totalorder %s131, %s132
      %p141 = scmp.eq.s32.totalorder %s32, 0
      %p142 = por %p140, %p141
      %p143 = scmp.ne.s32.totalorder %s131, %s132
      %p144 = scmp.eq.s32.totalorder %s33, 1
      %p145 = por %p143, %p144
      %p147 = scmp.ne.s32.totalorder %s132, %s146
      %p148 = scmp.eq.s32.totalorder %s33, 0
      %p149 = por %p147, %p148
      %s151 = sadd.s32 %s150, 1
      %p154 = scmp.eq.s32.totalorder %s27, 1
      %p155 = scmp.ne.s32.totalorder %s150, %s152
      %p156 = scmp.eq.s32.totalorder %s27, 0
      %p157 = por %p155, %p156
      %p158 = scmp.ne.s32.totalorder %s150, %s152
      %p159 = scmp.eq.s32.totalorder %s32, 1
      %p160 = por %p158, %p159
      %p161 = scmp.ne.s32.totalorder %s152, %s153
      %p162 = scmp.eq.s32.totalorder %s32, 0
      %p163 = por %p161, %p162
      %p164 = scmp.ne.s32.totalorder %s152, %s153
      %p165 = scmp.eq.s32.totalorder %s33, 1
      %p166 = por %p164, %p165
      %p168 = scmp.ne.s32.totalorder %s153, %s167
      %p169 = scmp.eq.s32.totalorder %s33, 0
      %p170 = por %p168, %p169
      %s172 = sadd.s32 %s171, 1
      %p175 = scmp.eq.s32.totalorder %s27, 1
      %p176 = scmp.ne.s32.totalorder %s171, %s173
      %p177 = scmp.eq.s32.totalorder %s27, 0
      %p178 = por %p176, %p177
      %p179 = scmp.ne.s32.totalorder %s171, %s173
      %p180 = scmp.eq.s32.totalorder %s32, 1
      %p181 = por %p179, %p180
      %p182 = scmp.ne.s32.totalorder %s173, %s174
      %p183 = scmp.eq.s32.totalorder %s32, 0
      %p184 = por %p182, %p183
      %p185 = scmp.ne.s32.totalorder %s173, %s174
      %p186 = scmp.eq.s32.totalorder %s33, 1
      %p187 = por %p185, %p186
      %p189 = scmp.ne.s32.totalorder %s174, %s188
      %p190 = scmp.eq.s32.totalorder %s33, 0
      %p191 = por %p189, %p190
      %s193 = sadd.s32 %s192, 1
      %p196 = scmp.eq.s32.totalorder %s27, 1
      %p197 = scmp.ne.s32.totalorder %s192, %s194
      %p198 = scmp.eq.s32.totalorder %s27, 0
      %p199 = por %p197, %p198
      %p200 = scmp.ne.s32.totalorder %s192, %s194
      %p201 = scmp.eq.s32.totalorder %s32, 1
      %p202 = por %p200, %p201
      %p203 = scmp.ne.s32.totalorder %s194, %s195
      %p204 = scmp.eq.s32.totalorder %s32, 0
      %p205 = por %p203, %p204
      %p206 = scmp.ne.s32.totalorder %s194, %s195
      %p207 = scmp.eq.s32.totalorder %s33, 1
      %p208 = por %p206, %p207
      %p210 = scmp.ne.s32.totalorder %s195, %s209
      %p211 = scmp.eq.s32.totalorder %s33, 0
      %p212 = por %p210, %p211
      %s214 = sadd.s32 %s213, 1
      %p217 = scmp.eq.s32.totalorder %s27, 1
      %p218 = scmp.ne.s32.totalorder %s213, %s215
      %p219 = scmp.eq.s32.totalorder %s27, 0
      %p220 = por %p218, %p219
      %p221 = scmp.ne.s32.totalorder %s213, %s215
      %p222 = scmp.eq.s32.totalorder %s32, 1
      %p223 = por %p221, %p222
      %p224 = scmp.ne.s32.totalorder %s215, %s216
      %p225 = scmp.eq.s32.totalorder %s32, 0
      %p226 = por %p224, %p225
      %p227 = scmp.ne.s32.totalorder %s215, %s216
      %p228 = scmp.eq.s32.totalorder %s33, 1
      %p229 = por %p227, %p228
      %p231 = scmp.ne.s32.totalorder %s216, %s230
      %p232 = scmp.eq.s32.totalorder %s33, 0
      %p233 = por %p231, %p232
      %s235 = sadd.s32 %s234, 1
      %p238 = scmp.eq.s32.totalorder %s27, 1
      %p239 = scmp.ne.s32.totalorder %s234, %s236
      %p240 = scmp.eq.s32.totalorder %s27, 0
      %p241 = por %p239, %p240
      %p242 = scmp.ne.s32.totalorder %s234, %s236
      %p243 = scmp.eq.s32.totalorder %s32, 1
      %p244 = por %p242, %p243
      %p245 = scmp.ne.s32.totalorder %s236, %s237
      %p246 = scmp.eq.s32.totalorder %s32, 0
      %p247 = por %p245, %p246
      %p248 = scmp.ne.s32.totalorder %s236, %s237
      %p249 = scmp.eq.s32.totalorder %s33, 1
      %p250 = por %p248, %p249
      %p252 = scmp.ne.s32.totalorder %s237, %s251
      %p253 = scmp.eq.s32.totalorder %s33, 0
      %p254 = por %p252, %p253
      %s256 = sadd.s32 %s255, 1
      %p259 = scmp.eq.s32.totalorder %s27, 1
      %p260 = scmp.ne.s32.totalorder %s255, %s257
      %p261 = scmp.eq.s32.totalorder %s27, 0
      %p262 = por %p260, %p261
      %p263 = scmp.ne.s32.totalorder %s255, %s257
      %p264 = scmp.eq.s32.totalorder %s32, 1
      %p265 = por %p263, %p264
      %p266 = scmp.ne.s32.totalorder %s257, %s258
      %p267 = scmp.eq.s32.totalorder %s32, 0
      %p268 = por %p266, %p267
      %p269 = scmp.ne.s32.totalorder %s257, %s258
      %p270 = scmp.eq.s32.totalorder %s33, 1
      %p271 = por %p269, %p270
      %p273 = scmp.ne.s32.totalorder %s258, %s272
      %p274 = scmp.eq.s32.totalorder %s33, 0
      %p275 = por %p273, %p274
      %s277 = sadd.s32 %s276, 1
      %p280 = scmp.eq.s32.totalorder %s27, 1
      %p281 = scmp.ne.s32.totalorder %s276, %s278
      %p282 = scmp.eq.s32.totalorder %s27, 0
      %p283 = por %p281, %p282
      %p284 = scmp.ne.s32.totalorder %s276, %s278
      %p285 = scmp.eq.s32.totalorder %s32, 1
      %p286 = por %p284, %p285
      %p287 = scmp.ne.s32.totalorder %s278, %s279
      %p288 = scmp.eq.s32.totalorder %s32, 0
      %p289 = por %p287, %p288
      %p290 = scmp.ne.s32.totalorder %s278, %s279
      %p291 = scmp.eq.s32.totalorder %s33, 1
      %p292 = por %p290, %p291
      %p294 = scmp.ne.s32.totalorder %s279, %s293
      %p295 = scmp.eq.s32.totalorder %s33, 0
      %p296 = por %p294, %p295
      %s297 = ssub.s32 %s27, %s34
      %p298 = scmp.eq.s32.totalorder %s297, 0
      %s300 = sadd.s32 %s299, 1
      %s301 = scalar_select %p298, %s299, %s300
      %p304 = pneg %p298
      %p305 = scmp.eq.s32.totalorder %s27, 1
      %p306 = por %p304, %p305
      %p307 = scmp.ne.s32.totalorder %s299, %s302
      %p308 = scmp.eq.s32.totalorder %s27, 0
      %p309 = por %p307, %p308
      %p310 = scmp.ne.s32.totalorder %s299, %s302
      %p311 = scmp.eq.s32.totalorder %s32, 1
      %p312 = por %p310, %p311
      %p313 = scmp.ne.s32.totalorder %s302, %s303
      %p314 = scmp.eq.s32.totalorder %s32, 0
      %p315 = por %p313, %p314
      %p316 = scmp.ne.s32.totalorder %s302, %s303
      %p317 = scmp.eq.s32.totalorder %s33, 1
      %p318 = por %p316, %p317
      %p320 = scmp.ne.s32.totalorder %s303, %s319
      %p321 = scmp.eq.s32.totalorder %s33, 0
      %p322 = por %p320, %p321
      %p323 = scmp.le.s32.totalorder 1, %s27
      %p324 = scmp.lt.s32.totalorder %s27, 3
      %p325 = pnand %p323, %p324
      %p326 = pneg %p325
      // Predicated region
      $region9: #{tpu_custom_call.1} parent=5 // pred_check
        _
      $region10: #{tpu_custom_call.1} parent=5 // pred_check_branch
        %328 = sbr.rel (%p325) target = $region12
      $region11: #{tpu_custom_call.1} parent=5 // pred_region
        %s329 = ssub.s32 %s27, 1
        // Predicated region
        $region13: #{tpu_custom_call.1} parent=11 // pred_check
          %p330 = pneg %p100
        $region14: #{tpu_custom_call.1} parent=11 // pred_check_branch
          %332 = sbr.rel (%p330) target = $region16
        $region15: #{tpu_custom_call.1} parent=11 // pred_region
          %s334 = ssub.s32 256, 256
          %335 = vsyncadd [#allocation6], %s334
          %s336 = sshll.u32 [#allocation5], 4
          %s337 = int_to_ptr.vmem [resolvable:$true] %s336
          %342 = dma.hbm_to_vmem [thread:$0]  %s2, 256, %s337, [#allocation6], 64, 64, 4
        $region16: #{tpu_custom_call.1} parent=11 // pred_fallthru
          _
        // Predicated region
        $region17: #{tpu_custom_call.1} parent=11 // pred_check
          %p343 = pneg %p121
        $region18: #{tpu_custom_call.1} parent=11 // pred_check_branch
          %345 = sbr.rel (%p343) target = $region20
        $region19: #{tpu_custom_call.1} parent=11 // pred_region
          %s347 = ssub.s32 16, 16
          %348 = vsyncadd [#allocation6], %s347
          %s350 = sshll.u32 [#allocation7], 4
          %s351 = int_to_ptr.vmem [resolvable:$true] %s350
          %353 = dma.hbm_to_vmem [thread:$0]  %s3, 16, %s351, [#allocation6]
        $region20: #{tpu_custom_call.1} parent=11 // pred_fallthru
          _
        // Predicated region
        $region21: #{tpu_custom_call.1} parent=11 // pred_check
          %p354 = pneg %p142
        $region22: #{tpu_custom_call.1} parent=11 // pred_check_branch
          %356 = sbr.rel (%p354) target = $region24
        $region23: #{tpu_custom_call.1} parent=11 // pred_region
          %s358 = ssub.s32 256, 256
          %359 = vsyncadd [#allocation9], %s358
          %s360 = sshll.u32 [#allocation8], 4
          %s361 = int_to_ptr.vmem [resolvable:$true] %s360
          %366 = dma.hbm_to_vmem [thread:$0]  %s4, 256, %s361, [#allocation9], 64, 64, 4
        $region24: #{tpu_custom_call.1} parent=11 // pred_fallthru
          _
        // Predicated region
        $region25: #{tpu_custom_call.1} parent=11 // pred_check
          %p367 = pneg %p163
        $region26: #{tpu_custom_call.1} parent=11 // pred_check_branch
          %369 = sbr.rel (%p367) target = $region28
        $region27: #{tpu_custom_call.1} parent=11 // pred_region
          %s371 = ssub.s32 16, 16
          %372 = vsyncadd [#allocation9], %s371
          %s374 = sshll.u32 [#allocation10], 4
          %s375 = int_to_ptr.vmem [resolvable:$true] %s374
          %377 = dma.hbm_to_vmem [thread:$0]  %s5, 16, %s375, [#allocation9]
        $region28: #{tpu_custom_call.1} parent=11 // pred_fallthru
          _
        // Predicated region
        $region29: #{tpu_custom_call.1} parent=11 // pred_check
          %p378 = pneg %p184
        $region30: #{tpu_custom_call.1} parent=11 // pred_check_branch
          %380 = sbr.rel (%p378) target = $region32
        $region31: #{tpu_custom_call.1} parent=11 // pred_region
          _
        $region32: #{tpu_custom_call.1} parent=11 // pred_fallthru
          _
        // Predicated region
        $region33: #{tpu_custom_call.1} parent=11 // pred_check
          %p381 = pneg %p205
        $region34: #{tpu_custom_call.1} parent=11 // pred_check_branch
          %383 = sbr.rel (%p381) target = $region36
        $region35: #{tpu_custom_call.1} parent=11 // pred_region
          %s385 = ssub.s32 16, 16
          %386 = vsyncadd [#allocation12], %s385
          %s388 = sshll.u32 [#allocation11], 4
          %s389 = int_to_ptr.vmem [resolvable:$true] %s388
          %391 = dma.hbm_to_vmem [thread:$0]  %s7, 16, %s389, [#allocation12]
        $region36: #{tpu_custom_call.1} parent=11 // pred_fallthru
          _
        // Predicated region
        $region37: #{tpu_custom_call.1} parent=11 // pred_check
          %p392 = pneg %p226
        $region38: #{tpu_custom_call.1} parent=11 // pred_check_branch
          %394 = sbr.rel (%p392) target = $region40
        $region39: #{tpu_custom_call.1} parent=11 // pred_region
          %s396 = ssub.s32 256, 256
          %397 = vsyncadd [#allocation12], %s396
          %s398 = sshll.u32 [#allocation13], 4
          %s399 = int_to_ptr.vmem [resolvable:$true] %s398
          %404 = dma.hbm_to_vmem [thread:$0]  %s8, 256, %s399, [#allocation12], 64, 64, 4
        $region40: #{tpu_custom_call.1} parent=11 // pred_fallthru
          _
        // Predicated region
        $region41: #{tpu_custom_call.1} parent=11 // pred_check
          %p405 = pneg %p247
        $region42: #{tpu_custom_call.1} parent=11 // pred_check_branch
          %407 = sbr.rel (%p405) target = $region44
        $region43: #{tpu_custom_call.1} parent=11 // pred_region
          _
        $region44: #{tpu_custom_call.1} parent=11 // pred_fallthru
          _
        // Predicated region
        $region45: #{tpu_custom_call.1} parent=11 // pred_check
          %p408 = pneg %p268
        $region46: #{tpu_custom_call.1} parent=11 // pred_check_branch
          %410 = sbr.rel (%p408) target = $region48
        $region47: #{tpu_custom_call.1} parent=11 // pred_region
          _
        $region48: #{tpu_custom_call.1} parent=11 // pred_fallthru
          _
        // Predicated region
        $region49: #{tpu_custom_call.1} parent=11 // pred_check
          %p411 = pneg %p289
        $region50: #{tpu_custom_call.1} parent=11 // pred_check_branch
          %413 = sbr.rel (%p411) target = $region52
        $region51: #{tpu_custom_call.1} parent=11 // pred_region
          _
        $region52: #{tpu_custom_call.1} parent=11 // pred_fallthru
          _
      $region12: #{tpu_custom_call.1} parent=5 // pred_fallthru
        _
      %p414 = scmp.lt.s32.totalorder %s27, 2
      // Predicated region
      $region53: #{tpu_custom_call.1} parent=5 // pred_check
        %p415 = pneg %p414
      $region54: #{tpu_custom_call.1} parent=5 // pred_check_branch
        %417 = sbr.rel (%p415) target = $region56
      $region55: #{tpu_custom_call.1} parent=5 // pred_region
        // Predicated region
        $region57: #{tpu_custom_call.1} parent=55 // pred_check
          %p418 = pneg %p47
        $region58: #{tpu_custom_call.1} parent=55 // pred_check_branch
          %420 = sbr.rel (%p418) target = $region60
        $region59: #{tpu_custom_call.1} parent=55 // pred_region
          %s421 = sand.u32 %s37, 1
          %s422 = scalar_lea.sflag [#allocation3], %s421
          %s423 = sand.u32 %s37, 1
          %s424 = smul.addr %s423, 8
          %s425 = scalar_lea.vmem [#allocation2], %s424
          %s427 = ssub.s32 128, 128
          %428 = vsyncadd %s422, %s427
          %s429 = smul.addr %s27, 128
          %s430 = scalar_lea.hbm %s0, %s429
          %s432 = sshll.u32 %s425, 4
          %s433 = int_to_ptr.vmem [resolvable:$true] %s432
          %435 = dma.hbm_to_vmem [thread:$0]  %s430, 128, %s433, %s422
        $region60: #{tpu_custom_call.1} parent=55 // pred_fallthru
          _
        // Predicated region
        $region61: #{tpu_custom_call.1} parent=55 // pred_check
          %p436 = pneg %p73
        $region62: #{tpu_custom_call.1} parent=55 // pred_check_branch
          %438 = sbr.rel (%p436) target = $region64
        $region63: #{tpu_custom_call.1} parent=55 // pred_region
          %p439 = scmp.lt.s32.totalorder %s27, 1
          %s440 = scalar_select %p439, %s27, 1
          %s441 = scalar_lea.vmem %s1, %s440
        $region64: #{tpu_custom_call.1} parent=55 // pred_fallthru
          _
      $region56: #{tpu_custom_call.1} parent=5 // pred_fallthru
        _
      %p442 = scmp.le.s32.totalorder 1, %s27
      %p443 = scmp.lt.s32.totalorder %s27, 3
      %p444 = pnand %p442, %p443
      %p445 = pneg %p444
      // Predicated region
      $region65: #{tpu_custom_call.1} parent=5 // pred_check
        _
      $region66: #{tpu_custom_call.1} parent=5 // pred_check_branch
        %447 = sbr.rel (%p444) target = $region68
      $region67: #{tpu_custom_call.1} parent=5 // pred_region
        %s448 = ssub.s32 %s27, 1
        %s449 = sand.u32 %s40, 1
        %s450 = scalar_lea.sflag [#allocation3], %s449
        %s451 = sand.u32 %s40, 1
        %s452 = smul.addr %s451, 8
        %s453 = scalar_lea.vmem [#allocation2], %s452
        // Predicated region
        $region69: #{tpu_custom_call.1} parent=67 // pred_check
          %p454 = pneg %p53
        $region70: #{tpu_custom_call.1} parent=67 // pred_check_branch
          %456 = sbr.rel (%p454) target = $region72
        $region71: #{tpu_custom_call.1} parent=67 // pred_region
          %457 = dma.done %s450, 128
        $region72: #{tpu_custom_call.1} parent=67 // pred_fallthru
          _
        // Predicated region
        $region73: #{tpu_custom_call.1} parent=67 // pred_check
          %p458 = pneg %p100
        $region74: #{tpu_custom_call.1} parent=67 // pred_check_branch
          %460 = sbr.rel (%p458) target = $region76
        $region75: #{tpu_custom_call.1} parent=67 // pred_region
          %461 = dma.done [#allocation6], 256
        $region76: #{tpu_custom_call.1} parent=67 // pred_fallthru
          _
        // Predicated region
        $region77: #{tpu_custom_call.1} parent=67 // pred_check
          %p462 = pneg %p121
        $region78: #{tpu_custom_call.1} parent=67 // pred_check_branch
          %464 = sbr.rel (%p462) target = $region80
        $region79: #{tpu_custom_call.1} parent=67 // pred_region
          %465 = dma.done [#allocation6], 16
        $region80: #{tpu_custom_call.1} parent=67 // pred_fallthru
          _
        // Predicated region
        $region81: #{tpu_custom_call.1} parent=67 // pred_check
          %p466 = pneg %p142
        $region82: #{tpu_custom_call.1} parent=67 // pred_check_branch
          %468 = sbr.rel (%p466) target = $region84
        $region83: #{tpu_custom_call.1} parent=67 // pred_region
          %469 = dma.done [#allocation9], 256
        $region84: #{tpu_custom_call.1} parent=67 // pred_fallthru
          _
        // Predicated region
        $region85: #{tpu_custom_call.1} parent=67 // pred_check
          %p470 = pneg %p163
        $region86: #{tpu_custom_call.1} parent=67 // pred_check_branch
          %472 = sbr.rel (%p470) target = $region88
        $region87: #{tpu_custom_call.1} parent=67 // pred_region
          %473 = dma.done [#allocation9], 16
        $region88: #{tpu_custom_call.1} parent=67 // pred_fallthru
          _
        // Predicated region
        $region89: #{tpu_custom_call.1} parent=67 // pred_check
          %p474 = pneg %p205
        $region90: #{tpu_custom_call.1} parent=67 // pred_check_branch
          %476 = sbr.rel (%p474) target = $region92
        $region91: #{tpu_custom_call.1} parent=67 // pred_region
          %477 = dma.done [#allocation12], 16
        $region92: #{tpu_custom_call.1} parent=67 // pred_fallthru
          _
        // Predicated region
        $region93: #{tpu_custom_call.1} parent=67 // pred_check
          %p478 = pneg %p226
        $region94: #{tpu_custom_call.1} parent=67 // pred_check_branch
          %480 = sbr.rel (%p478) target = $region96
        $region95: #{tpu_custom_call.1} parent=67 // pred_region
          %481 = dma.done [#allocation12], 256
        $region96: #{tpu_custom_call.1} parent=67 // pred_fallthru
          _
        %s482 = sand.u32 %s40, 1
        %s483 = scalar_lea.sflag [#allocation3], %s482
        %s484 = sand.u32 %s40, 1
        %s485 = smul.addr %s484, 8
        %s486 = scalar_lea.vmem [#allocation2], %s485
        %p487 = pneg %p53
        %p488 = pneg %p50
        %p489 = scmp.lt.s32.totalorder %s32, 1
        %s490 = scalar_select %p489, %s32, 1
        %s491 = scalar_lea.vmem %s1, %s490
        %p492 = pneg %p79
        %p493 = pneg %p76
        %p494 = pneg %p100
        %p495 = pneg %p97
        %p496 = pneg %p121
        %p497 = pneg %p118
        %p498 = pneg %p142
        %p499 = pneg %p139
        %p500 = pneg %p163
        %p501 = pneg %p160
        %p502 = pneg %p184
        %p503 = pneg %p181
        %p504 = pneg %p205
        %p505 = pneg %p202
        %p506 = pneg %p226
        %p507 = pneg %p223
        %p508 = pneg %p247
        %p509 = pneg %p244
        %p510 = pneg %p268
        %p511 = pneg %p265
        %p512 = pneg %p289
        %p513 = pneg %p286
        %p514 = pneg %p315
        %p515 = pneg %p312
        %s516 = sand.u32 %s302, 1
        %s517 = scalar_lea.sflag [#allocation4], %s516
        %s518 = sand.u32 %s302, 1
        %s519 = smul.addr %s518, 8
        %s520 = scalar_lea.vmem [#allocation14], %s519
        %p521 = scmp.lt.s32.totalorder %s32, 1
        %s522 = scalar_select %p521, %s32, 1
        %s523 = scalar_lea.vmem %s1, %s522
        %v525 = vld [vmem:[%s453] sm:$0xff]
        %v526 = vld [vmem:[%s523] sm:$0x1]
        %527 = vxpose.xlu0.b32.start [1/16] %v526, 128
        %528 = vxpose.xlu0.b32.cont [2/16] 0.0, 128
        %529 = vxpose.xlu0.b32.cont [3/16] 0.0, 128
        %530 = vxpose.xlu0.b32.cont [4/16] 0.0, 128
        %531 = vxpose.xlu0.b32.cont [5/16] 0.0, 128
        %532 = vxpose.xlu0.b32.cont [6/16] 0.0, 128
        %533 = vxpose.xlu0.b32.cont [7/16] 0.0, 128
        %534 = vxpose.xlu0.b32.cont [8/16] 0.0, 128
        %535 = vxpose.xlu0.b32.cont [9/16] 0.0, 128
        %536 = vxpose.xlu0.b32.cont [10/16] 0.0, 128
        %537 = vxpose.xlu0.b32.cont [11/16] 0.0, 128
        %538 = vxpose.xlu0.b32.cont [12/16] 0.0, 128
        %539 = vxpose.xlu0.b32.cont [13/16] 0.0, 128
        %540 = vxpose.xlu0.b32.cont [14/16] 0.0, 128
        %541 = vxpose.xlu0.b32.cont [15/16] 0.0, 128
        %542 = vxpose.xlu0.b32.end [16/16] 0.0, 128
        %v543 = vpop.trf.xlu0
        %v544 = vpop.trf.xlu0
        %v545 = vpop.trf.xlu0
        %v546 = vpop.trf.xlu0
        %v547 = vpop.trf.xlu0
        %v548 = vpop.trf.xlu0
        %v549 = vpop.trf.xlu0
        %v550 = vpop.trf.xlu0
        %v551 = vpop.trf.xlu0
        %v552 = vpop.trf.xlu0
        %v553 = vpop.trf.xlu0
        %v554 = vpop.trf.xlu0
        %v555 = vpop.trf.xlu0
        %v556 = vpop.trf.xlu0
        %v557 = vpop.trf.xlu0
        %v558 = vpop.trf.xlu0
        %560 = vset.pattern.permute.xlu0 0
        %561 = vperm.xlu0 %560, %v543
        %v562 = vpop.permute.xlu0 %561
        %v564 = vmul.f32 %v525, %v562
        %v565 = vld [vmem:[%s10] sm:$0x1]
        %v566 = vld [vmem:[%s11] sm:$0x1]
        %vm567 = vcmask 261120
        %v568 = vsel %vm567, %v564, 0.0
        %569 = vadd.xlane.f32.xlu0 %v568
        %v570 = vpop.xlane.xlu0 %569
        %v571 = vrcp.pop 32.0
        %v572 = vmul.f32 %v570, %v571
        %v573 = vsub.f32 %v564, %v572
        %v574 = vmul.f32 %v573, %v573
        %v575 = vsel %vm567, %v574, 0.0
        %576 = vadd.xlane.f32.xlu0 %v575
        %v577 = vpop.xlane.xlu0 %576
        %v578 = vmul.f32 %v577, %v571
        %v579 = vadd.f32 %v578, 1e-05
        %v580 = vrsqrt.pop %v579
        %v581 = vmul.f32 %v573, %v580
        %v582 = vlaneseq
        %v583 = vshrl.u32 %v582, 7
        %v584 = vsub.s32 0, %v583
        %v585 = vrot.slane %v565, %v584
        %v586 = vmul.f32 %v581, %v585
        %v587 = vlaneseq
        %v588 = vshrl.u32 %v587, 7
        %v589 = vsub.s32 0, %v588
        %v590 = vrot.slane %v566, %v589
        %v591 = vadd.f32 %v586, %v590
        %v592 = vpack.c.bf16 %v591, %v591
        %v593 = vld [vmem:[#allocation5] sm:$0xf]
        %v594 = vld [vmem:[#allocation5 + $0x4] sm:$0xf]
        %v595 = vld [vmem:[#allocation5 + $0x8] sm:$0xf]
        %v596 = vld [vmem:[#allocation5 + $0xc] sm:$0xf]
        %v597 = vld [vmem:[#allocation7] sm:$0x1]
        %v599 = vlaneseq
        %v600 = vshrl.u32 %v599, 7
        %v601 = vsub.s32 0, %v600
        %v602 = vrot.slane %v597, %v601
        %v608 = vunpack.c.l.b16 %v593
        %v609 = vunpack.c.l.b16 %v594
        %v610 = vunpack.c.l.b16 %v595
        %v611 = vunpack.c.l.b16 %v596
        %v612 = vpack.c.b16 %v609, %v608
        %v613 = vpack.c.b16 %v611, %v610
        %v617 = vsel %vm567, %v592, 0
        %619 = vmatprep.subr.bf16.mxu0 0
        %620 = vmatpush1.bf16.msra.mxu0 %v612
        %621 = vmatprep.subr.bf16.mxu0 0
        %622 = vmatpush1.bf16.msra.mxu0 %v613
        %623 = vmatprep.subr.bf16.mxu0 0
        %624 = vmatpush1.bf16.msra.mxu0 0
        %625 = vmatprep.subr.bf16.mxu0 0
        %626 = vmatpush1.bf16.msra.mxu0 0
        %627 = vmatprep.subr.bf16.mxu0 0
        %628 = vmatpush1.bf16.msra.mxu0 0
        %629 = vmatprep.subr.bf16.mxu0 0
        %630 = vmatpush1.bf16.msra.mxu0 0
        %631 = vmatprep.subr.bf16.mxu0 0
        %632 = vmatpush1.bf16.msra.mxu0 0
        %633 = vmatprep.subr.bf16.mxu0 0
        %634 = vmatpush1.bf16.msra.mxu0 0
        %635 = vmatprep.subr.bf16.mxu0 0
        %636 = vmatpush1.bf16.msra.mxu0 0
        %637 = vmatprep.subr.bf16.mxu0 0
        %638 = vmatpush1.bf16.msra.mxu0 0
        %639 = vmatprep.subr.bf16.mxu0 0
        %640 = vmatpush1.bf16.msra.mxu0 0
        %641 = vmatprep.subr.bf16.mxu0 0
        %642 = vmatpush1.bf16.msra.mxu0 0
        %643 = vmatprep.subr.bf16.mxu0 0
        %644 = vmatpush1.bf16.msra.mxu0 0
        %645 = vmatprep.subr.bf16.mxu0 0
        %646 = vmatpush1.bf16.msra.mxu0 0
        %647 = vmatprep.subr.bf16.mxu0 0
        %648 = vmatpush1.bf16.msra.mxu0 0
        %649 = vmatprep.subr.bf16.mxu0 0
        %650 = vmatpush1.bf16.msra.mxu0 0
        %651 = vmatprep.mubr.bf16.mxu0 0
        %652 = vmatmul.mubr.bf16.gmra.mrb[0].mxu0 %v617
        %v653 = vpop.f32.mrb[0].mxu0
        %v654 = vadd.f32 %v602, %v653
        %v655 = vpop.f32.mrb[0].mxu0
        %v656 = vpop.f32.mrb[0].mxu0
        %v657 = vpop.f32.mrb[0].mxu0
        %658 = vdwg.mxu0
        %v659 = vpack.c.bf16 %v564, %v564
        %v660 = vld [vmem:[#allocation8] sm:$0xf]
        %v661 = vld [vmem:[#allocation8 + $0x4] sm:$0xf]
        %v662 = vld [vmem:[#allocation8 + $0x8] sm:$0xf]
        %v663 = vld [vmem:[#allocation8 + $0xc] sm:$0xf]
        %v664 = vld [vmem:[#allocation10] sm:$0x1]
        %v666 = vlaneseq
        %v667 = vshrl.u32 %v666, 7
        %v668 = vsub.s32 0, %v667
        %v669 = vrot.slane %v664, %v668
        %v675 = vunpack.c.l.b16 %v660
        %v676 = vunpack.c.l.b16 %v661
        %v677 = vunpack.c.l.b16 %v662
        %v678 = vunpack.c.l.b16 %v663
        %v679 = vpack.c.b16 %v676, %v675
        %v680 = vpack.c.b16 %v678, %v677
        %v684 = vsel %vm567, %v659, 0
        %686 = vmatprep.subr.bf16.mxu0 0
        %687 = vmatpush1.bf16.msra.mxu0 %v679
        %688 = vmatprep.subr.bf16.mxu0 0
        %689 = vmatpush1.bf16.msra.mxu0 %v680
        %690 = vmatprep.subr.bf16.mxu0 0
        %691 = vmatpush1.bf16.msra.mxu0 0
        %692 = vmatprep.subr.bf16.mxu0 0
        %693 = vmatpush1.bf16.msra.mxu0 0
        %694 = vmatprep.subr.bf16.mxu0 0
        %695 = vmatpush1.bf16.msra.mxu0 0
        %696 = vmatprep.subr.bf16.mxu0 0
        %697 = vmatpush1.bf16.msra.mxu0 0
        %698 = vmatprep.subr.bf16.mxu0 0
        %699 = vmatpush1.bf16.msra.mxu0 0
        %700 = vmatprep.subr.bf16.mxu0 0
        %701 = vmatpush1.bf16.msra.mxu0 0
        %702 = vmatprep.subr.bf16.mxu0 0
        %703 = vmatpush1.bf16.msra.mxu0 0
        %704 = vmatprep.subr.bf16.mxu0 0
        %705 = vmatpush1.bf16.msra.mxu0 0
        %706 = vmatprep.subr.bf16.mxu0 0
        %707 = vmatpush1.bf16.msra.mxu0 0
        %708 = vmatprep.subr.bf16.mxu0 0
        %709 = vmatpush1.bf16.msra.mxu0 0
        %710 = vmatprep.subr.bf16.mxu0 0
        %711 = vmatpush1.bf16.msra.mxu0 0
        %712 = vmatprep.subr.bf16.mxu0 0
        %713 = vmatpush1.bf16.msra.mxu0 0
        %714 = vmatprep.subr.bf16.mxu0 0
        %715 = vmatpush1.bf16.msra.mxu0 0
        %716 = vmatprep.subr.bf16.mxu0 0
        %717 = vmatpush1.bf16.msra.mxu0 0
        %718 = vmatprep.mubr.bf16.mxu0 0
        %719 = vmatmul.mubr.bf16.gmra.mrb[0].mxu0 %v684
        %v720 = vpop.f32.mrb[0].mxu0
        %v721 = vadd.f32 %v669, %v720
        %v722 = vpop.f32.mrb[0].mxu0
        %v723 = vpop.f32.mrb[0].mxu0
        %v724 = vpop.f32.mrb[0].mxu0
        %725 = vdwg.mxu0
        %727 = vrot.lane.b32.xlu0 %v654, 120
        %v728 = vpop.permute.xlu0 %727
        %730 = vrot.lane.b32.xlu0 %v654, 112
        %v731 = vpop.permute.xlu0 %730
        %733 = vrot.lane.b32.xlu0 %v654, 104
        %v734 = vpop.permute.xlu0 %733
        %737 = vrot.lane.b32.xlu0 %v721, 120
        %v738 = vpop.permute.xlu0 %737
        %740 = vrot.lane.b32.xlu0 %v721, 112
        %v741 = vpop.permute.xlu0 %740
        %743 = vrot.lane.b32.xlu0 %v721, 104
        %v744 = vpop.permute.xlu0 %743
        %v746 = vmul.f32 %v654, 0.17677669
        %v747 = vmul.f32 %v728, 0.17677669
        %v748 = vmul.f32 %v731, 0.17677669
        %v749 = vmul.f32 %v734, 0.17677669
        %v750 = vpack.c.bf16 %v746, %v746
        %v751 = vpack.c.bf16 %v747, %v747
        %v752 = vpack.c.bf16 %v748, %v748
        %v753 = vpack.c.bf16 %v749, %v749
        %v754 = vpack.c.bf16 %v721, %v721
        %v755 = vpack.c.bf16 %v738, %v738
        %v756 = vpack.c.bf16 %v741, %v741
        %v757 = vpack.c.bf16 %v744, %v744
        %vm758 = vcmask 64512
        %v760 = vsel %vm758, %v750, 0
        %v763 = vsel %vm758, %v754, 0
        %765 = vmatprep.subr.bf16.mxu0 0
        %766 = vmatpush1.bf16.xpose.msra.mxu0 %v763
        %767 = vmatprep.subr.bf16.mxu0 0
        %768 = vmatpush1.bf16.xpose.msra.mxu0 0
        %769 = vmatprep.subr.bf16.mxu0 0
        %770 = vmatpush1.bf16.xpose.msra.mxu0 0
        %771 = vmatprep.subr.bf16.mxu0 0
        %772 = vmatpush1.bf16.xpose.msra.mxu0 0
        %773 = vmatprep.subr.bf16.mxu0 0
        %774 = vmatpush1.bf16.xpose.msra.mxu0 0
        %775 = vmatprep.subr.bf16.mxu0 0
        %776 = vmatpush1.bf16.xpose.msra.mxu0 0
        %777 = vmatprep.subr.bf16.mxu0 0
        %778 = vmatpush1.bf16.xpose.msra.mxu0 0
        %779 = vmatprep.subr.bf16.mxu0 0
        %780 = vmatpush1.bf16.xpose.msra.mxu0 0
        %781 = vmatprep.subr.bf16.mxu0 0
        %782 = vmatpush1.bf16.xpose.msra.mxu0 0
        %783 = vmatprep.subr.bf16.mxu0 0
        %784 = vmatpush1.bf16.xpose.msra.mxu0 0
        %785 = vmatprep.subr.bf16.mxu0 0
        %786 = vmatpush1.bf16.xpose.msra.mxu0 0
        %787 = vmatprep.subr.bf16.mxu0 0
        %788 = vmatpush1.bf16.xpose.msra.mxu0 0
        %789 = vmatprep.subr.bf16.mxu0 0
        %790 = vmatpush1.bf16.xpose.msra.mxu0 0
        %791 = vmatprep.subr.bf16.mxu0 0
        %792 = vmatpush1.bf16.xpose.msra.mxu0 0
        %793 = vmatprep.subr.bf16.mxu0 0
        %794 = vmatpush1.bf16.xpose.msra.mxu0 0
        %795 = vmatprep.subr.bf16.mxu0 0
        %796 = vmatpush1.bf16.xpose.msra.mxu0 0
        %797 = vmatprep.mubr.bf16.mxu0 0
        %798 = vmatmul.mubr.bf16.gmra.mrb[0].mxu0 %v760
        %v799 = vpop.f32.mrb[0].mxu0
        %v800 = vadd.f32 0.0, %v799
        %v801 = vpop.f32.mrb[0].mxu0
        %v802 = vpop.f32.mrb[0].mxu0
        %v803 = vpop.f32.mrb[0].mxu0
        %804 = vdwg.mxu0
        %v806 = vsel %vm758, %v751, 0
        %v809 = vsel %vm758, %v755, 0
        %811 = vmatprep.subr.bf16.mxu0 0
        %812 = vmatpush1.bf16.xpose.msra.mxu0 %v809
        %813 = vmatprep.subr.bf16.mxu0 0
        %814 = vmatpush1.bf16.xpose.msra.mxu0 0
        %815 = vmatprep.subr.bf16.mxu0 0
        %816 = vmatpush1.bf16.xpose.msra.mxu0 0
        %817 = vmatprep.subr.bf16.mxu0 0
        %818 = vmatpush1.bf16.xpose.msra.mxu0 0
        %819 = vmatprep.subr.bf16.mxu0 0
        %820 = vmatpush1.bf16.xpose.msra.mxu0 0
        %821 = vmatprep.subr.bf16.mxu0 0
        %822 = vmatpush1.bf16.xpose.msra.mxu0 0
        %823 = vmatprep.subr.bf16.mxu0 0
        %824 = vmatpush1.bf16.xpose.msra.mxu0 0
        %825 = vmatprep.subr.bf16.mxu0 0
        %826 = vmatpush1.bf16.xpose.msra.mxu0 0
        %827 = vmatprep.subr.bf16.mxu0 0
        %828 = vmatpush1.bf16.xpose.msra.mxu0 0
        %829 = vmatprep.subr.bf16.mxu0 0
        %830 = vmatpush1.bf16.xpose.msra.mxu0 0
        %831 = vmatprep.subr.bf16.mxu0 0
        %832 = vmatpush1.bf16.xpose.msra.mxu0 0
        %833 = vmatprep.subr.bf16.mxu0 0
        %834 = vmatpush1.bf16.xpose.msra.mxu0 0
        %835 = vmatprep.subr.bf16.mxu0 0
        %836 = vmatpush1.bf16.xpose.msra.mxu0 0
        %837 = vmatprep.subr.bf16.mxu0 0
        %838 = vmatpush1.bf16.xpose.msra.mxu0 0
        %839 = vmatprep.subr.bf16.mxu0 0
        %840 = vmatpush1.bf16.xpose.msra.mxu0 0
        %841 = vmatprep.subr.bf16.mxu0 0
        %842 = vmatpush1.bf16.xpose.msra.mxu0 0
        %843 = vmatprep.mubr.bf16.mxu0 0
        %844 = vmatmul.mubr.bf16.gmra.mrb[0].mxu0 %v806
        %v845 = vpop.f32.mrb[0].mxu0
        %v846 = vadd.f32 0.0, %v845
        %v847 = vpop.f32.mrb[0].mxu0
        %v848 = vpop.f32.mrb[0].mxu0
        %v849 = vpop.f32.mrb[0].mxu0
        %850 = vdwg.mxu0
        %v852 = vsel %vm758, %v752, 0
        %v855 = vsel %vm758, %v756, 0
        %857 = vmatprep.subr.bf16.mxu0 0
        %858 = vmatpush1.bf16.xpose.msra.mxu0 %v855
        %859 = vmatprep.subr.bf16.mxu0 0
        %860 = vmatpush1.bf16.xpose.msra.mxu0 0
        %861 = vmatprep.subr.bf16.mxu0 0
        %862 = vmatpush1.bf16.xpose.msra.mxu0 0
        %863 = vmatprep.subr.bf16.mxu0 0
        %864 = vmatpush1.bf16.xpose.msra.mxu0 0
        %865 = vmatprep.subr.bf16.mxu0 0
        %866 = vmatpush1.bf16.xpose.msra.mxu0 0
        %867 = vmatprep.subr.bf16.mxu0 0
        %868 = vmatpush1.bf16.xpose.msra.mxu0 0
        %869 = vmatprep.subr.bf16.mxu0 0
        %870 = vmatpush1.bf16.xpose.msra.mxu0 0
        %871 = vmatprep.subr.bf16.mxu0 0
        %872 = vmatpush1.bf16.xpose.msra.mxu0 0
        %873 = vmatprep.subr.bf16.mxu0 0
        %874 = vmatpush1.bf16.xpose.msra.mxu0 0
        %875 = vmatprep.subr.bf16.mxu0 0
        %876 = vmatpush1.bf16.xpose.msra.mxu0 0
        %877 = vmatprep.subr.bf16.mxu0 0
        %878 = vmatpush1.bf16.xpose.msra.mxu0 0
        %879 = vmatprep.subr.bf16.mxu0 0
        %880 = vmatpush1.bf16.xpose.msra.mxu0 0
        %881 = vmatprep.subr.bf16.mxu0 0
        %882 = vmatpush1.bf16.xpose.msra.mxu0 0
        %883 = vmatprep.subr.bf16.mxu0 0
        %884 = vmatpush1.bf16.xpose.msra.mxu0 0
        %885 = vmatprep.subr.bf16.mxu0 0
        %886 = vmatpush1.bf16.xpose.msra.mxu0 0
        %887 = vmatprep.subr.bf16.mxu0 0
        %888 = vmatpush1.bf16.xpose.msra.mxu0 0
        %889 = vmatprep.mubr.bf16.mxu0 0
        %890 = vmatmul.mubr.bf16.gmra.mrb[0].mxu0 %v852
        %v891 = vpop.f32.mrb[0].mxu0
        %v892 = vadd.f32 0.0, %v891
        %v893 = vpop.f32.mrb[0].mxu0
        %v894 = vpop.f32.mrb[0].mxu0
        %v895 = vpop.f32.mrb[0].mxu0
        %896 = vdwg.mxu0
        %v898 = vsel %vm758, %v753, 0
        %v901 = vsel %vm758, %v757, 0
        %903 = vmatprep.subr.bf16.mxu0 0
        %904 = vmatpush1.bf16.xpose.msra.mxu0 %v901
        %905 = vmatprep.subr.bf16.mxu0 0
        %906 = vmatpush1.bf16.xpose.msra.mxu0 0
        %907 = vmatprep.subr.bf16.mxu0 0
        %908 = vmatpush1.bf16.xpose.msra.mxu0 0
        %909 = vmatprep.subr.bf16.mxu0 0
        %910 = vmatpush1.bf16.xpose.msra.mxu0 0
        %911 = vmatprep.subr.bf16.mxu0 0
        %912 = vmatpush1.bf16.xpose.msra.mxu0 0
        %913 = vmatprep.subr.bf16.mxu0 0
        %914 = vmatpush1.bf16.xpose.msra.mxu0 0
        %915 = vmatprep.subr.bf16.mxu0 0
        %916 = vmatpush1.bf16.xpose.msra.mxu0 0
        %917 = vmatprep.subr.bf16.mxu0 0
        %918 = vmatpush1.bf16.xpose.msra.mxu0 0
        %919 = vmatprep.subr.bf16.mxu0 0
        %920 = vmatpush1.bf16.xpose.msra.mxu0 0
        %921 = vmatprep.subr.bf16.mxu0 0
        %922 = vmatpush1.bf16.xpose.msra.mxu0 0
        %923 = vmatprep.subr.bf16.mxu0 0
        %924 = vmatpush1.bf16.xpose.msra.mxu0 0
        %925 = vmatprep.subr.bf16.mxu0 0
        %926 = vmatpush1.bf16.xpose.msra.mxu0 0
        %927 = vmatprep.subr.bf16.mxu0 0
        %928 = vmatpush1.bf16.xpose.msra.mxu0 0
        %929 = vmatprep.subr.bf16.mxu0 0
        %930 = vmatpush1.bf16.xpose.msra.mxu0 0
        %931 = vmatprep.subr.bf16.mxu0 0
        %932 = vmatpush1.bf16.xpose.msra.mxu0 0
        %933 = vmatprep.subr.bf16.mxu0 0
        %934 = vmatpush1.bf16.xpose.msra.mxu0 0
        %935 = vmatprep.mubr.bf16.mxu0 0
        %936 = vmatmul.mubr.bf16.gmra.mrb[0].mxu0 %v898
        %v937 = vpop.f32.mrb[0].mxu0
        %v938 = vadd.f32 0.0, %v937
        %v939 = vpop.f32.mrb[0].mxu0
        %v940 = vpop.f32.mrb[0].mxu0
        %v941 = vpop.f32.mrb[0].mxu0
        %942 = vdwg.mxu0
        %v943 = vand.u32 2147483647, %v570
        %vm944 = vcmp.gt.f32.partialorder %v943, 0.0
        %v945 = vsel %vm944, 1, 0
        %v946 = vcvt.s32.f32 %v945
        %947 = vxpose.xlu0.b32.start [1/16] %v946, 128
        %948 = vxpose.xlu0.b32.cont [2/16] 0.0, 128
        %949 = vxpose.xlu0.b32.cont [3/16] 0.0, 128
        %950 = vxpose.xlu0.b32.cont [4/16] 0.0, 128
        %951 = vxpose.xlu0.b32.cont [5/16] 0.0, 128
        %952 = vxpose.xlu0.b32.cont [6/16] 0.0, 128
        %953 = vxpose.xlu0.b32.cont [7/16] 0.0, 128
        %954 = vxpose.xlu0.b32.cont [8/16] 0.0, 128
        %955 = vxpose.xlu0.b32.cont [9/16] 0.0, 128
        %956 = vxpose.xlu0.b32.cont [10/16] 0.0, 128
        %957 = vxpose.xlu0.b32.cont [11/16] 0.0, 128
        %958 = vxpose.xlu0.b32.cont [12/16] 0.0, 128
        %959 = vxpose.xlu0.b32.cont [13/16] 0.0, 128
        %960 = vxpose.xlu0.b32.cont [14/16] 0.0, 128
        %961 = vxpose.xlu0.b32.cont [15/16] 0.0, 128
        %962 = vxpose.xlu0.b32.end [16/16] 0.0, 128
        %v963 = vpop.trf.xlu0
        %v964 = vpop.trf.xlu0
        %v965 = vpop.trf.xlu0
        %v966 = vpop.trf.xlu0
        %v967 = vpop.trf.xlu0
        %v968 = vpop.trf.xlu0
        %v969 = vpop.trf.xlu0
        %v970 = vpop.trf.xlu0
        %v971 = vpop.trf.xlu0
        %v972 = vpop.trf.xlu0
        %v973 = vpop.trf.xlu0
        %v974 = vpop.trf.xlu0
        %v975 = vpop.trf.xlu0
        %v976 = vpop.trf.xlu0
        %v977 = vpop.trf.xlu0
        %v978 = vpop.trf.xlu0
        %vm979 = vcmp.gt.f32.partialorder %v963, 0.0
        %v980 = vsel %vm979, 1, 0
        %v981 = vlaneseq
        %v982 = vshrl.u32 %v981, 7
        %v983 = vsub.s32 0, %v982
        %v984 = vrot.slane %v980, %v983
        %vm985 = vcmp.eq.s32.totalorder %v984, 1
        %v986 = vsel %vm985, %v800, -4.2949673e+09
        %v987 = vsel %vm985, %v846, -4.2949673e+09
        %v988 = vsel %vm985, %v892, -4.2949673e+09
        %v989 = vsel %vm985, %v938, -4.2949673e+09
        %v990 = vlaneseq
        %v991 = vshrl.u32 %v990, 7
        %v992 = vlaneseq
        %v993 = vand.u32 %v992, 127
        %vm994 = vcmp.le.s32.totalorder %v993, %v991
        %v995 = vsel %vm994, 1, 0
        %vm996 = vcmp.eq.s32.totalorder %v995, 1
        %v997 = vsel %vm996, %v986, -4.2949673e+09
        %v998 = vsel %vm996, %v987, -4.2949673e+09
        %v999 = vsel %vm996, %v988, -4.2949673e+09
        %v1000 = vsel %vm996, %v989, -4.2949673e+09
        %v1001 = vsel %vm758, %v997, -inf
        %1002 = vmax.xlane.f32.xlu0 %v1001
        %v1003 = vpop.xlane.xlu0 %1002
        %v1004 = vsel %vm758, %v998, -inf
        %1005 = vmax.xlane.f32.xlu0 %v1004
        %v1006 = vpop.xlane.xlu0 %1005
        %v1007 = vsel %vm758, %v999, -inf
        %1008 = vmax.xlane.f32.xlu0 %v1007
        %v1009 = vpop.xlane.xlu0 %1008
        %v1010 = vsel %vm758, %v1000, -inf
        %1011 = vmax.xlane.f32.xlu0 %v1010
        %v1012 = vpop.xlane.xlu0 %1011
        %v1013 = vsub.f32 %v997, %v1003
        %v1014 = vsub.f32 %v998, %v1006
        %v1015 = vsub.f32 %v999, %v1009
        %v1016 = vsub.f32 %v1000, %v1012
        %v1017 = vmul.f32 %v1013, 1.442695
        %v1018 = vpow.pop %v1017
        %v1019 = vmul.f32 %v1014, 1.442695
        %v1020 = vpow.pop %v1019
        %v1021 = vmul.f32 %v1015, 1.442695
        %v1022 = vpow.pop %v1021
        %v1023 = vmul.f32 %v1016, 1.442695
        %v1024 = vpow.pop %v1023
        %v1025 = vsel %vm758, %v1018, 0.0
        %1026 = vadd.xlane.f32.xlu0 %v1025
        %v1027 = vpop.xlane.xlu0 %1026
        %v1028 = vsel %vm758, %v1020, 0.0
        %1029 = vadd.xlane.f32.xlu0 %v1028
        %v1030 = vpop.xlane.xlu0 %1029
        %v1031 = vsel %vm758, %v1022, 0.0
        %1032 = vadd.xlane.f32.xlu0 %v1031
        %v1033 = vpop.xlane.xlu0 %1032
        %v1034 = vsel %vm758, %v1024, 0.0
        %1035 = vadd.xlane.f32.xlu0 %v1034
        %v1036 = vpop.xlane.xlu0 %1035
        %v1037 = vrcp.pop %v1027
        %v1038 = vrcp.pop %v1030
        %v1039 = vrcp.pop %v1033
        %v1040 = vrcp.pop %v1036
        %v1041 = vmul.f32 %v1018, %v1037
        %v1042 = vmul.f32 %v1020, %v1038
        %v1043 = vmul.f32 %v1022, %v1039
        %v1044 = vmul.f32 %v1024, %v1040
        %v1045 = vpack.c.bf16 %v1041, %v1041
        %v1046 = vpack.c.bf16 %v1042, %v1042
        %v1047 = vpack.c.bf16 %v1043, %v1043
        %v1048 = vpack.c.bf16 %v1044, %v1044
        %1050 = vrot.lane.b32.xlu0 %v754, 96
        %v1051 = vpop.permute.xlu0 %1050
        %v1053 = vsel %vm758, %v1045, 0
        %vm1055 = vcmask 1043456
        %v1057 = vsel %vm1055, %v1051, 0
        %1059 = vmatprep.subr.bf16.mxu0 0
        %1060 = vmatpush1.bf16.msra.mxu0 %v1057
        %1061 = vmatprep.subr.bf16.mxu0 0
        %1062 = vmatpush1.bf16.msra.mxu0 0
        %1063 = vmatprep.subr.bf16.mxu0 0
        %1064 = vmatpush1.bf16.msra.mxu0 0
        %1065 = vmatprep.subr.bf16.mxu0 0
        %1066 = vmatpush1.bf16.msra.mxu0 0
        %1067 = vmatprep.subr.bf16.mxu0 0
        %1068 = vmatpush1.bf16.msra.mxu0 0
        %1069 = vmatprep.subr.bf16.mxu0 0
        %1070 = vmatpush1.bf16.msra.mxu0 0
        %1071 = vmatprep.subr.bf16.mxu0 0
        %1072 = vmatpush1.bf16.msra.mxu0 0
        %1073 = vmatprep.subr.bf16.mxu0 0
        %1074 = vmatpush1.bf16.msra.mxu0 0
        %1075 = vmatprep.subr.bf16.mxu0 0
        %1076 = vmatpush1.bf16.msra.mxu0 0
        %1077 = vmatprep.subr.bf16.mxu0 0
        %1078 = vmatpush1.bf16.msra.mxu0 0
        %1079 = vmatprep.subr.bf16.mxu0 0
        %1080 = vmatpush1.bf16.msra.mxu0 0
        %1081 = vmatprep.subr.bf16.mxu0 0
        %1082 = vmatpush1.bf16.msra.mxu0 0
        %1083 = vmatprep.subr.bf16.mxu0 0
        %1084 = vmatpush1.bf16.msra.mxu0 0
        %1085 = vmatprep.subr.bf16.mxu0 0
        %1086 = vmatpush1.bf16.msra.mxu0 0
        %1087 = vmatprep.subr.bf16.mxu0 0
        %1088 = vmatpush1.bf16.msra.mxu0 0
        %1089 = vmatprep.subr.bf16.mxu0 0
        %1090 = vmatpush1.bf16.msra.mxu0 0
        %1091 = vmatprep.mubr.bf16.mxu0 0
        %1092 = vmatmul.mubr.bf16.gmra.mrb[0].mxu0 %v1053
        %v1093 = vpop.f32.mrb[0].mxu0
        %v1094 = vadd.f32 0.0, %v1093
        %v1095 = vpop.f32.mrb[0].mxu0
        %v1096 = vpop.f32.mrb[0].mxu0
        %v1097 = vpop.f32.mrb[0].mxu0
        %1098 = vdwg.mxu0
        %1100 = vrot.lane.b32.xlu0 %v755, 96
        %v1101 = vpop.permute.xlu0 %1100
        %v1103 = vsel %vm758, %v1046, 0
        %v1106 = vsel %vm1055, %v1101, 0
        %1108 = vmatprep.subr.bf16.mxu0 0
        %1109 = vmatpush1.bf16.msra.mxu0 %v1106
        %1110 = vmatprep.subr.bf16.mxu0 0
        %1111 = vmatpush1.bf16.msra.mxu0 0
        %1112 = vmatprep.subr.bf16.mxu0 0
        %1113 = vmatpush1.bf16.msra.mxu0 0
        %1114 = vmatprep.subr.bf16.mxu0 0
        %1115 = vmatpush1.bf16.msra.mxu0 0
        %1116 = vmatprep.subr.bf16.mxu0 0
        %1117 = vmatpush1.bf16.msra.mxu0 0
        %1118 = vmatprep.subr.bf16.mxu0 0
        %1119 = vmatpush1.bf16.msra.mxu0 0
        %1120 = vmatprep.subr.bf16.mxu0 0
        %1121 = vmatpush1.bf16.msra.mxu0 0
        %1122 = vmatprep.subr.bf16.mxu0 0
        %1123 = vmatpush1.bf16.msra.mxu0 0
        %1124 = vmatprep.subr.bf16.mxu0 0
        %1125 = vmatpush1.bf16.msra.mxu0 0
        %1126 = vmatprep.subr.bf16.mxu0 0
        %1127 = vmatpush1.bf16.msra.mxu0 0
        %1128 = vmatprep.subr.bf16.mxu0 0
        %1129 = vmatpush1.bf16.msra.mxu0 0
        %1130 = vmatprep.subr.bf16.mxu0 0
        %1131 = vmatpush1.bf16.msra.mxu0 0
        %1132 = vmatprep.subr.bf16.mxu0 0
        %1133 = vmatpush1.bf16.msra.mxu0 0
        %1134 = vmatprep.subr.bf16.mxu0 0
        %1135 = vmatpush1.bf16.msra.mxu0 0
        %1136 = vmatprep.subr.bf16.mxu0 0
        %1137 = vmatpush1.bf16.msra.mxu0 0
        %1138 = vmatprep.subr.bf16.mxu0 0
        %1139 = vmatpush1.bf16.msra.mxu0 0
        %1140 = vmatprep.mubr.bf16.mxu0 0
        %1141 = vmatmul.mubr.bf16.gmra.mrb[0].mxu0 %v1103
        %v1142 = vpop.f32.mrb[0].mxu0
        %v1143 = vadd.f32 0.0, %v1142
        %v1144 = vpop.f32.mrb[0].mxu0
        %v1145 = vpop.f32.mrb[0].mxu0
        %v1146 = vpop.f32.mrb[0].mxu0
        %1147 = vdwg.mxu0
        %1149 = vrot.lane.b32.xlu0 %v756, 96
        %v1150 = vpop.permute.xlu0 %1149
        %v1152 = vsel %vm758, %v1047, 0
        %v1155 = vsel %vm1055, %v1150, 0
        %1157 = vmatprep.subr.bf16.mxu0 0
        %1158 = vmatpush1.bf16.msra.mxu0 %v1155
        %1159 = vmatprep.subr.bf16.mxu0 0
        %1160 = vmatpush1.bf16.msra.mxu0 0
        %1161 = vmatprep.subr.bf16.mxu0 0
        %1162 = vmatpush1.bf16.msra.mxu0 0
        %1163 = vmatprep.subr.bf16.mxu0 0
        %1164 = vmatpush1.bf16.msra.mxu0 0
        %1165 = vmatprep.subr.bf16.mxu0 0
        %1166 = vmatpush1.bf16.msra.mxu0 0
        %1167 = vmatprep.subr.bf16.mxu0 0
        %1168 = vmatpush1.bf16.msra.mxu0 0
        %1169 = vmatprep.subr.bf16.mxu0 0
        %1170 = vmatpush1.bf16.msra.mxu0 0
        %1171 = vmatprep.subr.bf16.mxu0 0
        %1172 = vmatpush1.bf16.msra.mxu0 0
        %1173 = vmatprep.subr.bf16.mxu0 0
        %1174 = vmatpush1.bf16.msra.mxu0 0
        %1175 = vmatprep.subr.bf16.mxu0 0
        %1176 = vmatpush1.bf16.msra.mxu0 0
        %1177 = vmatprep.subr.bf16.mxu0 0
        %1178 = vmatpush1.bf16.msra.mxu0 0
        %1179 = vmatprep.subr.bf16.mxu0 0
        %1180 = vmatpush1.bf16.msra.mxu0 0
        %1181 = vmatprep.subr.bf16.mxu0 0
        %1182 = vmatpush1.bf16.msra.mxu0 0
        %1183 = vmatprep.subr.bf16.mxu0 0
        %1184 = vmatpush1.bf16.msra.mxu0 0
        %1185 = vmatprep.subr.bf16.mxu0 0
        %1186 = vmatpush1.bf16.msra.mxu0 0
        %1187 = vmatprep.subr.bf16.mxu0 0
        %1188 = vmatpush1.bf16.msra.mxu0 0
        %1189 = vmatprep.mubr.bf16.mxu0 0
        %1190 = vmatmul.mubr.bf16.gmra.mrb[0].mxu0 %v1152
        %v1191 = vpop.f32.mrb[0].mxu0
        %v1192 = vadd.f32 0.0, %v1191
        %v1193 = vpop.f32.mrb[0].mxu0
        %v1194 = vpop.f32.mrb[0].mxu0
        %v1195 = vpop.f32.mrb[0].mxu0
        %1196 = vdwg.mxu0
        %1198 = vrot.lane.b32.xlu0 %v757, 96
        %v1199 = vpop.permute.xlu0 %1198
        %v1201 = vsel %vm758, %v1048, 0
        %v1204 = vsel %vm1055, %v1199, 0
        %1206 = vmatprep.subr.bf16.mxu0 0
        %1207 = vmatpush1.bf16.msra.mxu0 %v1204
        %1208 = vmatprep.subr.bf16.mxu0 0
        %1209 = vmatpush1.bf16.msra.mxu0 0
        %1210 = vmatprep.subr.bf16.mxu0 0
        %1211 = vmatpush1.bf16.msra.mxu0 0
        %1212 = vmatprep.subr.bf16.mxu0 0
        %1213 = vmatpush1.bf16.msra.mxu0 0
        %1214 = vmatprep.subr.bf16.mxu0 0
        %1215 = vmatpush1.bf16.msra.mxu0 0
        %1216 = vmatprep.subr.bf16.mxu0 0
        %1217 = vmatpush1.bf16.msra.mxu0 0
        %1218 = vmatprep.subr.bf16.mxu0 0
        %1219 = vmatpush1.bf16.msra.mxu0 0
        %1220 = vmatprep.subr.bf16.mxu0 0
        %1221 = vmatpush1.bf16.msra.mxu0 0
        %1222 = vmatprep.subr.bf16.mxu0 0
        %1223 = vmatpush1.bf16.msra.mxu0 0
        %1224 = vmatprep.subr.bf16.mxu0 0
        %1225 = vmatpush1.bf16.msra.mxu0 0
        %1226 = vmatprep.subr.bf16.mxu0 0
        %1227 = vmatpush1.bf16.msra.mxu0 0
        %1228 = vmatprep.subr.bf16.mxu0 0
        %1229 = vmatpush1.bf16.msra.mxu0 0
        %1230 = vmatprep.subr.bf16.mxu0 0
        %1231 = vmatpush1.bf16.msra.mxu0 0
        %1232 = vmatprep.subr.bf16.mxu0 0
        %1233 = vmatpush1.bf16.msra.mxu0 0
        %1234 = vmatprep.subr.bf16.mxu0 0
        %1235 = vmatpush1.bf16.msra.mxu0 0
        %1236 = vmatprep.subr.bf16.mxu0 0
        %1237 = vmatpush1.bf16.msra.mxu0 0
        %1238 = vmatprep.mubr.bf16.mxu0 0
        %1239 = vmatmul.mubr.bf16.gmra.mrb[0].mxu0 %v1201
        %v1240 = vpop.f32.mrb[0].mxu0
        %v1241 = vadd.f32 0.0, %v1240
        %v1242 = vpop.f32.mrb[0].mxu0
        %v1243 = vpop.f32.mrb[0].mxu0
        %v1244 = vpop.f32.mrb[0].mxu0
        %1245 = vdwg.mxu0
        %1247 = vrot.lane.b32.xlu0 %v1143, 8
        %v1248 = vpop.permute.xlu0 %1247
        %1251 = vrot.lane.b32.xlu0 %v1192, 16
        %v1252 = vpop.permute.xlu0 %1251
        %1255 = vrot.lane.b32.xlu0 %v1241, 24
        %v1256 = vpop.permute.xlu0 %1255
        %v1258 = vsel %vm758, %v1094, %v1248
        %vm1259 = vcmask 130048
        %v1260 = vsel %vm1259, %v1258, %v1252
        %vm1261 = vcmask 195584
        %v1262 = vsel %vm1261, %v1260, %v1256
        %v1263 = vsel %vm567, %v591, 0.0
        %1264 = vadd.xlane.f32.xlu0 %v1263
        %v1265 = vpop.xlane.xlu0 %1264
        %v1266 = vand.u32 2147483647, %v1265
        %vm1267 = vcmp.gt.f32.partialorder %v1266, 0.0
        %v1268 = vsel %vm1267, 1, 0
        %v1269 = vcvt.s32.f32 %v1268
        %v1270 = vmul.f32 %v1262, %v1269
        %v1271 = vadd.f32 %v1270, %v591
        %v1272 = vadd.f32 %v564, %v1271
        %v1273 = vld [vmem:[%s10 + $0x1] sm:$0x1]
        %v1274 = vld [vmem:[%s11 + $0x1] sm:$0x1]
        %v1275 = vsel %vm567, %v1272, 0.0
        %1276 = vadd.xlane.f32.xlu0 %v1275
        %v1277 = vpop.xlane.xlu0 %1276
        %v1278 = vmul.f32 %v1277, %v571
        %v1279 = vsub.f32 %v1272, %v1278
        %v1280 = vmul.f32 %v1279, %v1279
        %v1281 = vsel %vm567, %v1280, 0.0
        %1282 = vadd.xlane.f32.xlu0 %v1281
        %v1283 = vpop.xlane.xlu0 %1282
        %v1284 = vmul.f32 %v1283, %v571
        %v1285 = vadd.f32 %v1284, 1e-05
        %v1286 = vrsqrt.pop %v1285
        %v1287 = vmul.f32 %v1279, %v1286
        %v1288 = vlaneseq
        %v1289 = vshrl.u32 %v1288, 7
        %v1290 = vsub.s32 0, %v1289
        %v1291 = vrot.slane %v1273, %v1290
        %v1292 = vmul.f32 %v1287, %v1291
        %v1293 = vlaneseq
        %v1294 = vshrl.u32 %v1293, 7
        %v1295 = vsub.s32 0, %v1294
        %v1296 = vrot.slane %v1274, %v1295
        %v1297 = vadd.f32 %v1292, %v1296
        %v1298 = vpack.c.bf16 %v1297, %v1297
        %v1299 = vld [vmem:[%s6] sm:$0xf]
        %v1300 = vld [vmem:[%s6 + $0x4] sm:$0xf]
        %v1301 = vld [vmem:[%s6 + $0x8] sm:$0xf]
        %v1302 = vld [vmem:[%s6 + $0xc] sm:$0xf]
        %v1303 = vld [vmem:[#allocation11] sm:$0x1]
        %v1305 = vlaneseq
        %v1306 = vshrl.u32 %v1305, 7
        %v1307 = vsub.s32 0, %v1306
        %v1308 = vrot.slane %v1303, %v1307
        %v1314 = vunpack.c.l.b16 %v1299
        %v1315 = vunpack.c.l.b16 %v1300
        %v1316 = vunpack.c.l.b16 %v1301
        %v1317 = vunpack.c.l.b16 %v1302
        %v1318 = vpack.c.b16 %v1315, %v1314
        %v1319 = vpack.c.b16 %v1317, %v1316
        %v1323 = vsel %vm567, %v1298, 0
        %1325 = vmatprep.subr.bf16.mxu0 0
        %1326 = vmatpush1.bf16.msra.mxu0 %v1318
        %1327 = vmatprep.subr.bf16.mxu0 0
        %1328 = vmatpush1.bf16.msra.mxu0 %v1319
        %1329 = vmatprep.subr.bf16.mxu0 0
        %1330 = vmatpush1.bf16.msra.mxu0 0
        %1331 = vmatprep.subr.bf16.mxu0 0
        %1332 = vmatpush1.bf16.msra.mxu0 0
        %1333 = vmatprep.subr.bf16.mxu0 0
        %1334 = vmatpush1.bf16.msra.mxu0 0
        %1335 = vmatprep.subr.bf16.mxu0 0
        %1336 = vmatpush1.bf16.msra.mxu0 0
        %1337 = vmatprep.subr.bf16.mxu0 0
        %1338 = vmatpush1.bf16.msra.mxu0 0
        %1339 = vmatprep.subr.bf16.mxu0 0
        %1340 = vmatpush1.bf16.msra.mxu0 0
        %1341 = vmatprep.subr.bf16.mxu0 0
        %1342 = vmatpush1.bf16.msra.mxu0 0
        %1343 = vmatprep.subr.bf16.mxu0 0
        %1344 = vmatpush1.bf16.msra.mxu0 0
        %1345 = vmatprep.subr.bf16.mxu0 0
        %1346 = vmatpush1.bf16.msra.mxu0 0
        %1347 = vmatprep.subr.bf16.mxu0 0
        %1348 = vmatpush1.bf16.msra.mxu0 0
        %1349 = vmatprep.subr.bf16.mxu0 0
        %1350 = vmatpush1.bf16.msra.mxu0 0
        %1351 = vmatprep.subr.bf16.mxu0 0
        %1352 = vmatpush1.bf16.msra.mxu0 0
        %1353 = vmatprep.subr.bf16.mxu0 0
        %1354 = vmatpush1.bf16.msra.mxu0 0
        %1355 = vmatprep.subr.bf16.mxu0 0
        %1356 = vmatpush1.bf16.msra.mxu0 0
        %1357 = vmatprep.mubr.bf16.mxu0 0
        %1358 = vmatmul.mubr.bf16.gmra.mrb[0].mxu0 %v1323
        %v1359 = vpop.f32.mrb[0].mxu0
        %v1360 = vadd.f32 %v1308, %v1359
        %v1361 = vpop.f32.mrb[0].mxu0
        %v1362 = vpop.f32.mrb[0].mxu0
        %v1363 = vpop.f32.mrb[0].mxu0
        %1364 = vdwg.mxu0
        %v1365 = vmax.f32 %v1360, 0.0
        %v1366 = vpack.c.bf16 %v1365, %v1365
        %v1367 = vld [vmem:[#allocation13] sm:$0xf]
        %v1368 = vld [vmem:[#allocation13 + $0x4] sm:$0xf]
        %v1369 = vld [vmem:[#allocation13 + $0x8] sm:$0xf]
        %v1370 = vld [vmem:[#allocation13 + $0xc] sm:$0xf]
        %v1371 = vld [vmem:[%s9] sm:$0x1]
        %v1373 = vlaneseq
        %v1374 = vshrl.u32 %v1373, 7
        %v1375 = vsub.s32 0, %v1374
        %v1376 = vrot.slane %v1371, %v1375
        %v1382 = vunpack.c.l.b16 %v1367
        %v1383 = vunpack.c.l.b16 %v1368
        %v1384 = vunpack.c.l.b16 %v1369
        %v1385 = vunpack.c.l.b16 %v1370
        %v1386 = vpack.c.b16 %v1383, %v1382
        %v1387 = vpack.c.b16 %v1385, %v1384
        %v1391 = vsel %vm567, %v1366, 0
        %1393 = vmatprep.subr.bf16.mxu0 0
        %1394 = vmatpush1.bf16.msra.mxu0 %v1386
        %1395 = vmatprep.subr.bf16.mxu0 0
        %1396 = vmatpush1.bf16.msra.mxu0 %v1387
        %1397 = vmatprep.subr.bf16.mxu0 0
        %1398 = vmatpush1.bf16.msra.mxu0 0
        %1399 = vmatprep.subr.bf16.mxu0 0
        %1400 = vmatpush1.bf16.msra.mxu0 0
        %1401 = vmatprep.subr.bf16.mxu0 0
        %1402 = vmatpush1.bf16.msra.mxu0 0
        %1403 = vmatprep.subr.bf16.mxu0 0
        %1404 = vmatpush1.bf16.msra.mxu0 0
        %1405 = vmatprep.subr.bf16.mxu0 0
        %1406 = vmatpush1.bf16.msra.mxu0 0
        %1407 = vmatprep.subr.bf16.mxu0 0
        %1408 = vmatpush1.bf16.msra.mxu0 0
        %1409 = vmatprep.subr.bf16.mxu0 0
        %1410 = vmatpush1.bf16.msra.mxu0 0
        %1411 = vmatprep.subr.bf16.mxu0 0
        %1412 = vmatpush1.bf16.msra.mxu0 0
        %1413 = vmatprep.subr.bf16.mxu0 0
        %1414 = vmatpush1.bf16.msra.mxu0 0
        %1415 = vmatprep.subr.bf16.mxu0 0
        %1416 = vmatpush1.bf16.msra.mxu0 0
        %1417 = vmatprep.subr.bf16.mxu0 0
        %1418 = vmatpush1.bf16.msra.mxu0 0
        %1419 = vmatprep.subr.bf16.mxu0 0
        %1420 = vmatpush1.bf16.msra.mxu0 0
        %1421 = vmatprep.subr.bf16.mxu0 0
        %1422 = vmatpush1.bf16.msra.mxu0 0
        %1423 = vmatprep.subr.bf16.mxu0 0
        %1424 = vmatpush1.bf16.msra.mxu0 0
        %1425 = vmatprep.mubr.bf16.mxu0 0
        %1426 = vmatmul.mubr.bf16.gmra.mrb[0].mxu0 %v1391
        %v1427 = vpop.f32.mrb[0].mxu0
        %v1428 = vadd.f32 %v1376, %v1427
        %v1429 = vpop.f32.mrb[0].mxu0
        %v1430 = vpop.f32.mrb[0].mxu0
        %v1431 = vpop.f32.mrb[0].mxu0
        %1432 = vdwg.mxu0
        %v1433 = vadd.f32 %v1428, %v1297
        %v1434 = vld [vmem:[%s10 + $0x2] sm:$0x1]
        %v1435 = vld [vmem:[%s11 + $0x2] sm:$0x1]
        %v1436 = vsel %vm567, %v1433, 0.0
        %1437 = vadd.xlane.f32.xlu0 %v1436
        %v1438 = vpop.xlane.xlu0 %1437
        %v1439 = vmul.f32 %v1438, %v571
        %v1440 = vsub.f32 %v1433, %v1439
        %v1441 = vmul.f32 %v1440, %v1440
        %v1442 = vsel %vm567, %v1441, 0.0
        %1443 = vadd.xlane.f32.xlu0 %v1442
        %v1444 = vpop.xlane.xlu0 %1443
        %v1445 = vmul.f32 %v1444, %v571
        %v1446 = vadd.f32 %v1445, 1e-05
        %v1447 = vrsqrt.pop %v1446
        %v1448 = vmul.f32 %v1440, %v1447
        %v1449 = vlaneseq
        %v1450 = vshrl.u32 %v1449, 7
        %v1451 = vsub.s32 0, %v1450
        %v1452 = vrot.slane %v1434, %v1451
        %v1453 = vmul.f32 %v1448, %v1452
        %v1454 = vlaneseq
        %v1455 = vshrl.u32 %v1454, 7
        %v1456 = vsub.s32 0, %v1455
        %v1457 = vrot.slane %v1435, %v1456
        %v1458 = vadd.f32 %v1453, %v1457
        %v1459 = vmul.f32 %v1458, %v562
        %v1460 = vadd.f32 %v1272, %v1459
        %v1461 = vld [vmem:[%s10 + $0x3] sm:$0x1]
        %v1462 = vld [vmem:[%s11 + $0x3] sm:$0x1]
        %v1463 = vsel %vm567, %v1460, 0.0
        %1464 = vadd.xlane.f32.xlu0 %v1463
        %v1465 = vpop.xlane.xlu0 %1464
        %v1466 = vmul.f32 %v1465, %v571
        %v1467 = vsub.f32 %v1460, %v1466
        %v1468 = vmul.f32 %v1467, %v1467
        %v1469 = vsel %vm567, %v1468, 0.0
        %1470 = vadd.xlane.f32.xlu0 %v1469
        %v1471 = vpop.xlane.xlu0 %1470
        %v1472 = vmul.f32 %v1471, %v571
        %v1473 = vadd.f32 %v1472, 1e-05
        %v1474 = vrsqrt.pop %v1473
        %v1475 = vmul.f32 %v1467, %v1474
        %v1476 = vlaneseq
        %v1477 = vshrl.u32 %v1476, 7
        %v1478 = vsub.s32 0, %v1477
        %v1479 = vrot.slane %v1461, %v1478
        %v1480 = vmul.f32 %v1475, %v1479
        %v1481 = vlaneseq
        %v1482 = vshrl.u32 %v1481, 7
        %v1483 = vsub.s32 0, %v1482
        %v1484 = vrot.slane %v1462, %v1483
        %v1485 = vadd.f32 %v1480, %v1484
        %1486 = vst.msk [vmem:[%s520] sm:$0xff] %vm567, %v1485
        %s1487 = sand.u32 %s302, 1
        %s1488 = scalar_lea.sflag [#allocation4], %s1487
        %s1489 = sand.u32 %s302, 1
        %s1490 = smul.addr %s1489, 8
        %s1491 = scalar_lea.vmem [#allocation14], %s1490
        // Predicated region
        $region97: #{tpu_custom_call.1} parent=67 // pred_check
          %p1492 = pneg %p312
        $region98: #{tpu_custom_call.1} parent=67 // pred_check_branch
          %1494 = sbr.rel (%p1492) target = $region100
        $region99: #{tpu_custom_call.1} parent=67 // pred_region
          %s1496 = ssub.s32 128, 128
          %1497 = vsyncadd %s1488, %s1496
          %s1498 = smul.addr %s32, 128
          %s1499 = scalar_lea.hbm %s12, %s1498
          %s1501 = sshll.u32 %s1491, 4
          %s1502 = int_to_ptr.vmem [resolvable:$true] %s1501
          %1504 = dma.vmem_to_hbm [thread:$0]  %s1502, 128, %s1499, %s1488
        $region100: #{tpu_custom_call.1} parent=67 // pred_fallthru
          _
      $region68: #{tpu_custom_call.1} parent=5 // pred_fallthru
        _
      %p1505 = scmp.le.s32.totalorder 2, %s27
      // Predicated region
      $region101: #{tpu_custom_call.1} parent=5 // pred_check
        %p1506 = pneg %p1505
      $region102: #{tpu_custom_call.1} parent=5 // pred_check_branch
        %1508 = sbr.rel (%p1506) target = $region104
      $region103: #{tpu_custom_call.1} parent=5 // pred_region
        %s1509 = ssub.s32 %s27, 2
        // Predicated region
        $region105: #{tpu_custom_call.1} parent=103 // pred_check
          %p1510 = pneg %p318
        $region106: #{tpu_custom_call.1} parent=103 // pred_check_branch
          %1512 = sbr.rel (%p1510) target = $region108
        $region107: #{tpu_custom_call.1} parent=103 // pred_region
          %s1513 = sand.u32 %s303, 1
          %s1514 = scalar_lea.sflag [#allocation4], %s1513
          %s1515 = sand.u32 %s303, 1
          %s1516 = smul.addr %s1515, 8
          %s1517 = scalar_lea.vmem [#allocation14], %s1516
          %1518 = dma.done %s1514, 128
        $region108: #{tpu_custom_call.1} parent=103 // pred_fallthru
          _
      $region104: #{tpu_custom_call.1} parent=5 // pred_fallthru
        _
    $region6: #{tpu_custom_call.1} parent=1 // loop_footer
      %s31 = sadd.s32 1, %s27
    $region7: #{tpu_custom_call.1} parent=1 // loop_footer_branch
      %26 = sbr.rel target = $region3
    $region8: #{tpu_custom_call.1} parent=1 // loop_exit
      _
    %1519 = vsyncpa [#allocation3], 1
    %s1520 = scalar_lea.sflag [#allocation3], 1
    %1521 = vsyncpa %s1520, 1
    %1522 = vsyncpa [#allocation6], 1
    %1523 = vsyncpa [#allocation9], 1
    %1524 = vsyncpa [#allocation12], 1
    %1525 = vsyncpa [#allocation4], 1
    %s1526 = scalar_lea.sflag [#allocation4], 1
    %1527 = vsyncpa %s1526, 1

</llo_original>
